<compile_context>
chip_gen: v7x
topology: tpu7x:2x2x1
jax: 0.10.0
libtpu: 0.0.40
codegen_flags: <defaults>
</compile_context>

<pallas_src>
import functools

import jax
import jax.numpy as jnp
from jax import lax
from jax.experimental import pallas as pl
from jax.experimental.pallas import tpu as pltpu

KSIZE = 7
PAD = 3                      # SAME padding for kernel_size = 7
NTAPS = KSIZE * KSIZE


def _spatial_attention_kernel(wm_ref, x_ref, o_ref, sm_ref, acc_ref, *,
                              C, TC, HWp, W, ragged, use_vmem_acc):
    # wm_ref  : VMEM (49, 2, HWp) f32 -- per-tap (avg, max) weights * boundary masks
    # x_ref   : VMEM (1, TC, HWp)     -- one C-tile of one batch element (lane-dense)
    # o_ref   : VMEM (1, 1, HWp)      -- spatial attention map (lane-dense)
    # sm_ref  : VMEM (2, HWp) f32     -- stacked running [sum; max] accumulator
    # acc_ref : VMEM (2, HWp) f32     -- conv accumulator (used only for large HWp)
    k = pl.program_id(1)
    k_last = pl.num_programs(1) - 1

    # ---- running channel reduction over C tiles (lane-dense) ----------------
    x_blk = x_ref[0]                                               # (TC, HWp)
    part_sum = jnp.sum(x_blk, axis=0, keepdims=True, dtype=jnp.float32)
    if ragged:
        # Last C tile contains zero-padded channels; exclude them from the max.
        rem = C - k * TC
        ch = lax.broadcasted_iota(jnp.int32, (TC, HWp), 0)
        x_for_max = jnp.where(ch < rem, x_blk, -jnp.inf)
    else:
        x_for_max = x_blk
    part_max = jnp.max(x_for_max, axis=0, keepdims=True).astype(jnp.float32)

    @pl.when(k == 0)
    def _init():
        sm_ref[0:1, :] = part_sum
        sm_ref[1:2, :] = part_max

    @pl.when(k > 0)
    def _accumulate():
        sm_ref[0:1, :] = sm_ref[0:1, :] + part_sum
        sm_ref[1:2, :] = jnp.maximum(sm_ref[1:2, :], part_max)

    # ---- finalize: 7x7 conv via stacked lane rolls + weighted masks ---------
    @pl.when(k == k_last)
    def _finalize():
        sm = sm_ref[...]                                  # (2, HWp) [sum; max]
        if use_vmem_acc:
            acc_ref[...] = jnp.zeros_like(acc_ref)
        else:
            acc = jnp.zeros((2, HWp), jnp.float32)
        for di in range(KSIZE):
            for dj in range(KSIZE):
                d = (di - PAD) * W + (dj - PAD)           # flat offset of this tap
                sh = (-d) % HWp                           # static roll amount
                rolled = sm if sh == 0 else pltpu.roll(sm, shift=sh, axis=1)
                tap = rolled * wm_ref[di * KSIZE + dj]    # (2, HWp): mul + add only
                if use_vmem_acc:
                    acc_ref[...] = acc_ref[...] + tap
                else:
                    acc = acc + tap
        if use_vmem_acc:
            acc = acc_ref[...]
        o_ref[0] = jax.nn.sigmoid(acc[0:1, :] + acc[1:2, :]).astype(o_ref.dtype)


def _round_up(x, m):
    return (x + m - 1) // m * m


def _vmem_capacity_bytes():
    """Per-core physical VMEM (64 MiB on v7x, 128 MiB on v5e/v6e)."""
    default = 128 * 1024 * 1024
    try:
        info = pltpu.get_tpu_info()
        cap = int(getattr(info, "vmem_capacity_bytes", default))
        if cap > 0:
            return cap
    except Exception:
        pass
    return default


def _pick_c_tile(C, HWp, itemsize, x_budget_bytes):
    """Largest sublane-aligned C tile whose double-buffered block fits budget."""
    pack = {4: 8, 2: 16, 1: 32}.get(itemsize, 8)
    per_channel = HWp * itemsize
    cap = max(pack, (x_budget_bytes // (2 * per_channel)) // pack * pack)
    return int(min(cap, _round_up(C, pack)))


def spatial_attention(x, conv_weight):
    """x: (N, C, H, W); conv_weight: (1, 2, 7, 7) OIHW.  Returns (N, 1, H, W)."""
    N, C, H, W = x.shape
    HW = H * W
    HWp = _round_up(HW, 128)              # lane-dense, full-vreg last dim
    itemsize = x.dtype.itemsize

    # --- VMEM budgeting (generation-aware) -----------------------------------
    phys_vmem = _vmem_capacity_bytes()
    vmem_limit = int(phys_vmem * 0.75)    # ~48 MiB on v7x, ~96 MiB on v5e/v6e
    wm_bytes = NTAPS * 2 * HWp * 4
    scratch_bytes = 2 * (2 * HWp * 4)
    out_bytes = 2 * 1 * HWp * itemsize    # double-buffered output block
    fixed = wm_bytes + scratch_bytes + out_bytes + (4 << 20)   # + slack
    x_budget = max(1 << 20, vmem_limit - fixed)
    TC = _pick_c_tile(C, HWp, itemsize, x_budget)
    C_pad = _round_up(C, TC)
    n_ct = C_pad // TC
    ragged = C_pad != C
    use_vmem_acc = HWp > 2048             # spill guard for large spatial maps

    # --- host-side layout prep ------------------------------------------------
    x_flat = x.reshape(N, C, HW)
    x_flat = jnp.pad(x_flat, ((0, 0), (0, C_pad - C), (0, HWp - HW)))

    # SAME-padding boundary masks (flat layout), weights (and 1/C) folded in.
    pos = jnp.arange(HW, dtype=jnp.int32)
    row = pos // W
    col = pos % W
    off = jnp.arange(KSIZE, dtype=jnp.int32)[:, None] - PAD               # (7, 1)
    rmask = ((row[None, :] + off >= 0) & (row[None, :] + off < H)).astype(jnp.float32)
    cmask = ((col[None, :] + off >= 0) & (col[None, :] + off < W)).astype(jnp.float32)
    rmask = jnp.pad(rmask, ((0, 0), (0, HWp - HW)))
    cmask = jnp.pad(cmask, ((0, 0), (0, HWp - HW)))
    w = conv_weight.astype(jnp.float32).reshape(2, KSIZE, KSIZE)
    mask = rmask[:, None, :] * cmask[None, :, :]                          # (7,7,HWp)
    wm = jnp.stack([(w[0] / C)[:, :, None] * mask,                        # avg channel
                    w[1][:, :, None] * mask],                             # max channel
                   axis=2).reshape(NTAPS, 2, HWp)                         # (49,2,HWp)

    kernel = functools.partial(
        _spatial_attention_kernel, C=C, TC=TC, HWp=HWp, W=W,
        ragged=ragged, use_vmem_acc=use_vmem_acc)

    cost = pl.CostEstimate(
        flops=int(2 * N * C_pad * HWp + 4 * N * NTAPS * HWp),
        transcendentals=int(N * HWp),
        bytes_accessed=int(N * C_pad * HWp * itemsize + N * HWp * itemsize
                           + NTAPS * 2 * HWp * 4),
    )

    out = pl.pallas_call(
        kernel,
        out_shape=jax.ShapeDtypeStruct((N, 1, HWp), x.dtype),
        grid=(N, n_ct),
        in_specs=[
            pl.BlockSpec((NTAPS, 2, HWp), lambda n, k: (0, 0, 0)),   # wm (resident)
            pl.BlockSpec((1, TC, HWp), lambda n, k: (n, k, 0)),      # x C-tile
        ],
        out_specs=pl.BlockSpec((1, 1, HWp), lambda n, k: (n, 0, 0)),
        scratch_shapes=[pltpu.VMEM((2, HWp), jnp.float32),   # stacked running sum/max
                        pltpu.VMEM((2, HWp), jnp.float32)],  # conv accumulator
        compiler_params=pltpu.CompilerParams(
            dimension_semantics=("parallel", "arbitrary"),
            vmem_limit_bytes=vmem_limit),
        cost_estimate=cost,
    )(wm, x_flat)

    # TODO(synk): for v7x with N == 1 add a leading parallel axis splitting HW
    # across the two TensorCores (halo handled via extended masks).
    return out[:, :, :HW].reshape(N, 1, H, W)


def spatial_attention_ref(x, conv_weight):
    """Pure-JAX reference matching the PyTorch forward."""
    avg_out = jnp.mean(x, axis=1, keepdims=True)
    max_out = jnp.max(x, axis=1, keepdims=True)
    cat = jnp.concatenate([avg_out, max_out], axis=1)  # (N, 2, H, W)
    y = lax.conv_general_dilated(
        cat.astype(jnp.float32),
        conv_weight.astype(jnp.float32),
        window_strides=(1, 1),
        padding=[(PAD, PAD), (PAD, PAD)],
        dimension_numbers=("NCHW", "OIHW", "NCHW"),
    )
    return jax.nn.sigmoid(y).astype(x.dtype)


if __name__ == "__main__":
    key = jax.random.PRNGKey(0)
    kx, kw = jax.random.split(key)

    N, C, H, W = 2, 4, 16, 16
    x = jax.random.normal(kx, (N, C, H, W), dtype=jnp.float32)

    # Deterministic conv1 weight init (nn.Conv2d default: U(-b, b), b = 1/sqrt(fan_in))
    fan_in = 2 * KSIZE * KSIZE
    bound = 1.0 / jnp.sqrt(jnp.float32(fan_in))
    conv_weight = jax.random.uniform(
        kw, (1, 2, KSIZE, KSIZE), dtype=jnp.float32, minval=-bound, maxval=bound)

    out = spatial_attention(x, conv_weight)
    out = jax.block_until_ready(out)

    ref = spatial_attention_ref(x, conv_weight)
    assert out.shape == (N, 1, H, W), out.shape
    assert jnp.allclose(out, ref, rtol=1e-5, atol=1e-5), float(
        jnp.max(jnp.abs(out - ref)))

    print("KERNEL_OK")
</pallas_src>

<mosaic_0001>
module attributes {stable_mosaic.version = 11 : i64} {
  func.func @_spatial_attention_kernel(%arg0: i32, %arg1: i32, %arg2: memref<49x2x256xf32, #tpu.memory_space<vmem>>, %arg3: memref<1x8x256xf32, #tpu.memory_space<vmem>>, %arg4: memref<1x1x256xf32, #tpu.memory_space<vmem>>, %arg5: memref<2x256xf32, #tpu.memory_space<vmem>>, %arg6: memref<2x256xf32, #tpu.memory_space<vmem>>) attributes {dimension_semantics = [#tpu.dimension_semantics<parallel>, #tpu.dimension_semantics<arbitrary>], iteration_bounds = array<i64: 2, 1>, scalar_prefetch = 0 : i64, scratch_operands = 2 : i64, tpu.core_type = #tpu.core_type<tc>, window_params = [{pipeline_mode = #tpu.pipeline_mode<synchronous>, transform_indices = @transform_0, window_bounds = array<i64: 49, 2, 256>}, {transform_indices = @transform_1, window_bounds = array<i64: 1, 8, 256>}, {transform_indices = @transform_2, window_bounds = array<i64: 1, 1, 256>}]} {
    %c0 = arith.constant 0 : index
    %c0_0 = arith.constant 0 : index
    %c0_1 = arith.constant 0 : index
    %0 = vector.load %arg3[%c0, %c0_0, %c0_1] : memref<1x8x256xf32, #tpu.memory_space<vmem>>, vector<1x8x256xf32>
    %1 = vector.shape_cast %0 : vector<1x8x256xf32> to vector<8x256xf32>
    %cst = arith.constant dense<0.000000e+00> : vector<256xf32>
    %2 = vector.multi_reduction <add>, %1, %cst [0] : vector<8x256xf32> to vector<256xf32>
    %3 = vector.shape_cast %2 : vector<256xf32> to vector<1x256xf32>
    %c8_i32 = arith.constant 8 : i32
    %4 = arith.muli %arg1, %c8_i32 : i32
    %c4_i32 = arith.constant 4 : i32
    %5 = arith.subi %c4_i32, %4 : i32
    %6 = tpu.iota {dimensions = array<i32: 0>} : vector<8x256xi32>
    %7 = vector.broadcast %5 : i32 to vector<8x256xi32>
    %8 = arith.cmpi slt, %6, %7 : vector<8x256xi32>
    %cst_2 = arith.constant 0xFF800000 : f32
    %9 = vector.broadcast %cst_2 : f32 to vector<8x256xf32>
    %10 = arith.select %8, %1, %9 : vector<8x256xi1>, vector<8x256xf32>
    %cst_3 = arith.constant dense<0xFF800000> : vector<256xf32>
    %11 = vector.multi_reduction <maximumf>, %10, %cst_3 [0] : vector<8x256xf32> to vector<256xf32>
    %12 = vector.shape_cast %11 : vector<256xf32> to vector<1x256xf32>
    %c0_i32 = arith.constant 0 : i32
    %13 = arith.cmpi eq, %arg1, %c0_i32 : i32
    %14 = arith.extui %13 : i1 to i32
    %c0_i32_4 = arith.constant 0 : i32
    %15 = arith.cmpi ne, %14, %c0_i32_4 : i32
    scf.if %15 {
      %c0_9 = arith.constant 0 : index
      %c0_10 = arith.constant 0 : index
      %22 = vector.load %arg5[%c0_9, %c0_10] : memref<2x256xf32, #tpu.memory_space<vmem>>, vector<1x256xf32>
      tpu.vector_store %arg5[%c0_9, %c0_10], %3 {strides = array<i32>} : memref<2x256xf32, #tpu.memory_space<vmem>>, vector<1x256xf32>,
      %c1 = arith.constant 1 : index
      %c0_11 = arith.constant 0 : index
      %23 = vector.load %arg5[%c1, %c0_11] : memref<2x256xf32, #tpu.memory_space<vmem>>, vector<1x256xf32>
      tpu.vector_store %arg5[%c1, %c0_11], %12 {strides = array<i32>} : memref<2x256xf32, #tpu.memory_space<vmem>>, vector<1x256xf32>,
    } else {
    }
    %c0_i32_5 = arith.constant 0 : i32
    %16 = arith.cmpi sgt, %arg1, %c0_i32_5 : i32
    %17 = arith.extui %16 : i1 to i32
    %c0_i32_6 = arith.constant 0 : i32
    %18 = arith.cmpi ne, %17, %c0_i32_6 : i32
    scf.if %18 {
      %c0_9 = arith.constant 0 : index
      %c0_10 = arith.constant 0 : index
      %22 = vector.load %arg5[%c0_9, %c0_10] : memref<2x256xf32, #tpu.memory_space<vmem>>, vector<1x256xf32>
      %23 = arith.addf %22, %3 : vector<1x256xf32>
      %c0_11 = arith.constant 0 : index
      %c0_12 = arith.constant 0 : index
      %24 = vector.load %arg5[%c0_11, %c0_12] : memref<2x256xf32, #tpu.memory_space<vmem>>, vector<1x256xf32>
      tpu.vector_store %arg5[%c0_11, %c0_12], %23 {strides = array<i32>} : memref<2x256xf32, #tpu.memory_space<vmem>>, vector<1x256xf32>,
      %c1 = arith.constant 1 : index
      %c0_13 = arith.constant 0 : index
      %25 = vector.load %arg5[%c1, %c0_13] : memref<2x256xf32, #tpu.memory_space<vmem>>, vector<1x256xf32>
      %26 = arith.maximumf %25, %12 : vector<1x256xf32>
      %c1_14 = arith.constant 1 : index
      %c0_15 = arith.constant 0 : index
      %27 = vector.load %arg5[%c1_14, %c0_15] : memref<2x256xf32, #tpu.memory_space<vmem>>, vector<1x256xf32>
      tpu.vector_store %arg5[%c1_14, %c0_15], %26 {strides = array<i32>} : memref<2x256xf32, #tpu.memory_space<vmem>>, vector<1x256xf32>,
    } else {
    }
    %c0_i32_7 = arith.constant 0 : i32
    %19 = arith.cmpi eq, %arg1, %c0_i32_7 : i32
    %20 = arith.extui %19 : i1 to i32
    %c0_i32_8 = arith.constant 0 : i32
    %21 = arith.cmpi ne, %20, %c0_i32_8 : i32
    scf.if %21 {
      %c0_9 = arith.constant 0 : index
      %c0_10 = arith.constant 0 : index
      %22 = vector.load %arg5[%c0_9, %c0_10] : memref<2x256xf32, #tpu.memory_space<vmem>>, vector<2x256xf32>
      %cst_11 = arith.constant 0.000000e+00 : f32
      %23 = vector.broadcast %cst_11 : f32 to vector<2x256xf32>
      %c51_i32 = arith.constant 51 : i32
      %24 = tpu.dynamic_rotate %22 by %c51_i32 dim 1 : vector<2x256xf32>, i32 -> vector<2x256xf32>
      %c0_12 = arith.constant 0 : index
      %c0_13 = arith.constant 0 : index
      %c0_14 = arith.constant 0 : index
      %25 = vector.load %arg2[%c0_12, %c0_13, %c0_14] : memref<49x2x256xf32, #tpu.memory_space<vmem>>, vector<1x2x256xf32>
      %26 = vector.shape_cast %25 : vector<1x2x256xf32> to vector<2x256xf32>
      %27 = arith.mulf %24, %26 : vector<2x256xf32>
      %28 = arith.addf %23, %27 : vector<2x256xf32>
      %c50_i32 = arith.constant 50 : i32
      %29 = tpu.dynamic_rotate %22 by %c50_i32 dim 1 : vector<2x256xf32>, i32 -> vector<2x256xf32>
      %c1 = arith.constant 1 : index
      %c0_15 = arith.constant 0 : index
      %c0_16 = arith.constant 0 : index
      %30 = vector.load %arg2[%c1, %c0_15, %c0_16] : memref<49x2x256xf32, #tpu.memory_space<vmem>>, vector<1x2x256xf32>
      %31 = vector.shape_cast %30 : vector<1x2x256xf32> to vector<2x256xf32>
      %32 = arith.mulf %29, %31 : vector<2x256xf32>
      %33 = arith.addf %28, %32 : vector<2x256xf32>
      %c49_i32 = arith.constant 49 : i32
      %34 = tpu.dynamic_rotate %22 by %c49_i32 dim 1 : vector<2x256xf32>, i32 -> vector<2x256xf32>
      %c2 = arith.constant 2 : index
      %c0_17 = arith.constant 0 : index
      %c0_18 = arith.constant 0 : index
      %35 = vector.load %arg2[%c2, %c0_17, %c0_18] : memref<49x2x256xf32, #tpu.memory_space<vmem>>, vector<1x2x256xf32>
      %36 = vector.shape_cast %35 : vector<1x2x256xf32> to vector<2x256xf32>
      %37 = arith.mulf %34, %36 : vector<2x256xf32>
      %38 = arith.addf %33, %37 : vector<2x256xf32>
      %c48_i32 = arith.constant 48 : i32
      %39 = tpu.dynamic_rotate %22 by %c48_i32 dim 1 : vector<2x256xf32>, i32 -> vector<2x256xf32>
      %c3 = arith.constant 3 : index
      %c0_19 = arith.constant 0 : index
      %c0_20 = arith.constant 0 : index
      %40 = vector.load %arg2[%c3, %c0_19, %c0_20] : memref<49x2x256xf32, #tpu.memory_space<vmem>>, vector<1x2x256xf32>
      %41 = vector.shape_cast %40 : vector<1x2x256xf32> to vector<2x256xf32>
      %42 = arith.mulf %39, %41 : vector<2x256xf32>
      %43 = arith.addf %38, %42 : vector<2x256xf32>
      %c47_i32 = arith.constant 47 : i32
      %44 = tpu.dynamic_rotate %22 by %c47_i32 dim 1 : vector<2x256xf32>, i32 -> vector<2x256xf32>
      %c4 = arith.constant 4 : index
      %c0_21 = arith.constant 0 : index
      %c0_22 = arith.constant 0 : index
      %45 = vector.load %arg2[%c4, %c0_21, %c0_22] : memref<49x2x256xf32, #tpu.memory_space<vmem>>, vector<1x2x256xf32>
      %46 = vector.shape_cast %45 : vector<1x2x256xf32> to vector<2x256xf32>
      %47 = arith.mulf %44, %46 : vector<2x256xf32>
      %48 = arith.addf %43, %47 : vector<2x256xf32>
      %c46_i32 = arith.constant 46 : i32
      %49 = tpu.dynamic_rotate %22 by %c46_i32 dim 1 : vector<2x256xf32>, i32 -> vector<2x256xf32>
      %c5 = arith.constant 5 : index
      %c0_23 = arith.constant 0 : index
      %c0_24 = arith.constant 0 : index
      %50 = vector.load %arg2[%c5, %c0_23, %c0_24] : memref<49x2x256xf32, #tpu.memory_space<vmem>>, vector<1x2x256xf32>
      %51 = vector.shape_cast %50 : vector<1x2x256xf32> to vector<2x256xf32>
      %52 = arith.mulf %49, %51 : vector<2x256xf32>
      %53 = arith.addf %48, %52 : vector<2x256xf32>
      %c45_i32 = arith.constant 45 : i32
      %54 = tpu.dynamic_rotate %22 by %c45_i32 dim 1 : vector<2x256xf32>, i32 -> vector<2x256xf32>
      %c6 = arith.constant 6 : index
      %c0_25 = arith.constant 0 : index
      %c0_26 = arith.constant 0 : index
      %55 = vector.load %arg2[%c6, %c0_25, %c0_26] : memref<49x2x256xf32, #tpu.memory_space<vmem>>, vector<1x2x256xf32>
      %56 = vector.shape_cast %55 : vector<1x2x256xf32> to vector<2x256xf32>
      %57 = arith.mulf %54, %56 : vector<2x256xf32>
      %58 = arith.addf %53, %57 : vector<2x256xf32>
      %c35_i32 = arith.constant 35 : i32
      %59 = tpu.dynamic_rotate %22 by %c35_i32 dim 1 : vector<2x256xf32>, i32 -> vector<2x256xf32>
      %c7 = arith.constant 7 : index
      %c0_27 = arith.constant 0 : index
      %c0_28 = arith.constant 0 : index
      %60 = vector.load %arg2[%c7, %c0_27, %c0_28] : memref<49x2x256xf32, #tpu.memory_space<vmem>>, vector<1x2x256xf32>
      %61 = vector.shape_cast %60 : vector<1x2x256xf32> to vector<2x256xf32>
      %62 = arith.mulf %59, %61 : vector<2x256xf32>
      %63 = arith.addf %58, %62 : vector<2x256xf32>
      %c34_i32 = arith.constant 34 : i32
      %64 = tpu.dynamic_rotate %22 by %c34_i32 dim 1 : vector<2x256xf32>, i32 -> vector<2x256xf32>
      %c8 = arith.constant 8 : index
      %c0_29 = arith.constant 0 : index
      %c0_30 = arith.constant 0 : index
      %65 = vector.load %arg2[%c8, %c0_29, %c0_30] : memref<49x2x256xf32, #tpu.memory_space<vmem>>, vector<1x2x256xf32>
      %66 = vector.shape_cast %65 : vector<1x2x256xf32> to vector<2x256xf32>
      %67 = arith.mulf %64, %66 : vector<2x256xf32>
      %68 = arith.addf %63, %67 : vector<2x256xf32>
      %c33_i32 = arith.constant 33 : i32
      %69 = tpu.dynamic_rotate %22 by %c33_i32 dim 1 : vector<2x256xf32>, i32 -> vector<2x256xf32>
      %c9 = arith.constant 9 : index
      %c0_31 = arith.constant 0 : index
      %c0_32 = arith.constant 0 : index
      %70 = vector.load %arg2[%c9, %c0_31, %c0_32] : memref<49x2x256xf32, #tpu.memory_space<vmem>>, vector<1x2x256xf32>
      %71 = vector.shape_cast %70 : vector<1x2x256xf32> to vector<2x256xf32>
      %72 = arith.mulf %69, %71 : vector<2x256xf32>
      %73 = arith.addf %68, %72 : vector<2x256xf32>
      %c32_i32 = arith.constant 32 : i32
      %74 = tpu.dynamic_rotate %22 by %c32_i32 dim 1 : vector<2x256xf32>, i32 -> vector<2x256xf32>
      %c10 = arith.constant 10 : index
      %c0_33 = arith.constant 0 : index
      %c0_34 = arith.constant 0 : index
      %75 = vector.load %arg2[%c10, %c0_33, %c0_34] : memref<49x2x256xf32, #tpu.memory_space<vmem>>, vector<1x2x256xf32>
      %76 = vector.shape_cast %75 : vector<1x2x256xf32> to vector<2x256xf32>
      %77 = arith.mulf %74, %76 : vector<2x256xf32>
      %78 = arith.addf %73, %77 : vector<2x256xf32>
      %c31_i32 = arith.constant 31 : i32
      %79 = tpu.dynamic_rotate %22 by %c31_i32 dim 1 : vector<2x256xf32>, i32 -> vector<2x256xf32>
      %c11 = arith.constant 11 : index
      %c0_35 = arith.constant 0 : index
      %c0_36 = arith.constant 0 : index
      %80 = vector.load %arg2[%c11, %c0_35, %c0_36] : memref<49x2x256xf32, #tpu.memory_space<vmem>>, vector<1x2x256xf32>
      %81 = vector.shape_cast %80 : vector<1x2x256xf32> to vector<2x256xf32>
      %82 = arith.mulf %79, %81 : vector<2x256xf32>
      %83 = arith.addf %78, %82 : vector<2x256xf32>
      %c30_i32 = arith.constant 30 : i32
      %84 = tpu.dynamic_rotate %22 by %c30_i32 dim 1 : vector<2x256xf32>, i32 -> vector<2x256xf32>
      %c12 = arith.constant 12 : index
      %c0_37 = arith.constant 0 : index
      %c0_38 = arith.constant 0 : index
      %85 = vector.load %arg2[%c12, %c0_37, %c0_38] : memref<49x2x256xf32, #tpu.memory_space<vmem>>, vector<1x2x256xf32>
      %86 = vector.shape_cast %85 : vector<1x2x256xf32> to vector<2x256xf32>
      %87 = arith.mulf %84, %86 : vector<2x256xf32>
      %88 = arith.addf %83, %87 : vector<2x256xf32>
      %c29_i32 = arith.constant 29 : i32
      %89 = tpu.dynamic_rotate %22 by %c29_i32 dim 1 : vector<2x256xf32>, i32 -> vector<2x256xf32>
      %c13 = arith.constant 13 : index
      %c0_39 = arith.constant 0 : index
      %c0_40 = arith.constant 0 : index
      %90 = vector.load %arg2[%c13, %c0_39, %c0_40] : memref<49x2x256xf32, #tpu.memory_space<vmem>>, vector<1x2x256xf32>
      %91 = vector.shape_cast %90 : vector<1x2x256xf32> to vector<2x256xf32>
      %92 = arith.mulf %89, %91 : vector<2x256xf32>
      %93 = arith.addf %88, %92 : vector<2x256xf32>
      %c19_i32 = arith.constant 19 : i32
      %94 = tpu.dynamic_rotate %22 by %c19_i32 dim 1 : vector<2x256xf32>, i32 -> vector<2x256xf32>
      %c14 = arith.constant 14 : index
      %c0_41 = arith.constant 0 : index
      %c0_42 = arith.constant 0 : index
      %95 = vector.load %arg2[%c14, %c0_41, %c0_42] : memref<49x2x256xf32, #tpu.memory_space<vmem>>, vector<1x2x256xf32>
      %96 = vector.shape_cast %95 : vector<1x2x256xf32> to vector<2x256xf32>
      %97 = arith.mulf %94, %96 : vector<2x256xf32>
      %98 = arith.addf %93, %97 : vector<2x256xf32>
      %c18_i32 = arith.constant 18 : i32
      %99 = tpu.dynamic_rotate %22 by %c18_i32 dim 1 : vector<2x256xf32>, i32 -> vector<2x256xf32>
      %c15 = arith.constant 15 : index
      %c0_43 = arith.constant 0 : index
      %c0_44 = arith.constant 0 : index
      %100 = vector.load %arg2[%c15, %c0_43, %c0_44] : memref<49x2x256xf32, #tpu.memory_space<vmem>>, vector<1x2x256xf32>
      %101 = vector.shape_cast %100 : vector<1x2x256xf32> to vector<2x256xf32>
      %102 = arith.mulf %99, %101 : vector<2x256xf32>
      %103 = arith.addf %98, %102 : vector<2x256xf32>
      %c17_i32 = arith.constant 17 : i32
      %104 = tpu.dynamic_rotate %22 by %c17_i32 dim 1 : vector<2x256xf32>, i32 -> vector<2x256xf32>
      %c16 = arith.constant 16 : index
      %c0_45 = arith.constant 0 : index
      %c0_46 = arith.constant 0 : index
      %105 = vector.load %arg2[%c16, %c0_45, %c0_46] : memref<49x2x256xf32, #tpu.memory_space<vmem>>, vector<1x2x256xf32>
      %106 = vector.shape_cast %105 : vector<1x2x256xf32> to vector<2x256xf32>
      %107 = arith.mulf %104, %106 : vector<2x256xf32>
      %108 = arith.addf %103, %107 : vector<2x256xf32>
      %c16_i32 = arith.constant 16 : i32
      %109 = tpu.dynamic_rotate %22 by %c16_i32 dim 1 : vector<2x256xf32>, i32 -> vector<2x256xf32>
      %c17 = arith.constant 17 : index
      %c0_47 = arith.constant 0 : index
      %c0_48 = arith.constant 0 : index
      %110 = vector.load %arg2[%c17, %c0_47, %c0_48] : memref<49x2x256xf32, #tpu.memory_space<vmem>>, vector<1x2x256xf32>
      %111 = vector.shape_cast %110 : vector<1x2x256xf32> to vector<2x256xf32>
      %112 = arith.mulf %109, %111 : vector<2x256xf32>
      %113 = arith.addf %108, %112 : vector<2x256xf32>
      %c15_i32 = arith.constant 15 : i32
      %114 = tpu.dynamic_rotate %22 by %c15_i32 dim 1 : vector<2x256xf32>, i32 -> vector<2x256xf32>
      %c18 = arith.constant 18 : index
      %c0_49 = arith.constant 0 : index
      %c0_50 = arith.constant 0 : index
      %115 = vector.load %arg2[%c18, %c0_49, %c0_50] : memref<49x2x256xf32, #tpu.memory_space<vmem>>, vector<1x2x256xf32>
      %116 = vector.shape_cast %115 : vector<1x2x256xf32> to vector<2x256xf32>
      %117 = arith.mulf %114, %116 : vector<2x256xf32>
      %118 = arith.addf %113, %117 : vector<2x256xf32>
      %c14_i32 = arith.constant 14 : i32
      %119 = tpu.dynamic_rotate %22 by %c14_i32 dim 1 : vector<2x256xf32>, i32 -> vector<2x256xf32>
      %c19 = arith.constant 19 : index
      %c0_51 = arith.constant 0 : index
      %c0_52 = arith.constant 0 : index
      %120 = vector.load %arg2[%c19, %c0_51, %c0_52] : memref<49x2x256xf32, #tpu.memory_space<vmem>>, vector<1x2x256xf32>
      %121 = vector.shape_cast %120 : vector<1x2x256xf32> to vector<2x256xf32>
      %122 = arith.mulf %119, %121 : vector<2x256xf32>
      %123 = arith.addf %118, %122 : vector<2x256xf32>
      %c13_i32 = arith.constant 13 : i32
      %124 = tpu.dynamic_rotate %22 by %c13_i32 dim 1 : vector<2x256xf32>, i32 -> vector<2x256xf32>
      %c20 = arith.constant 20 : index
      %c0_53 = arith.constant 0 : index
      %c0_54 = arith.constant 0 : index
      %125 = vector.load %arg2[%c20, %c0_53, %c0_54] : memref<49x2x256xf32, #tpu.memory_space<vmem>>, vector<1x2x256xf32>
      %126 = vector.shape_cast %125 : vector<1x2x256xf32> to vector<2x256xf32>
      %127 = arith.mulf %124, %126 : vector<2x256xf32>
      %128 = arith.addf %123, %127 : vector<2x256xf32>
      %c3_i32 = arith.constant 3 : i32
      %129 = tpu.dynamic_rotate %22 by %c3_i32 dim 1 : vector<2x256xf32>, i32 -> vector<2x256xf32>
      %c21 = arith.constant 21 : index
      %c0_55 = arith.constant 0 : index
      %c0_56 = arith.constant 0 : index
      %130 = vector.load %arg2[%c21, %c0_55, %c0_56] : memref<49x2x256xf32, #tpu.memory_space<vmem>>, vector<1x2x256xf32>
      %131 = vector.shape_cast %130 : vector<1x2x256xf32> to vector<2x256xf32>
      %132 = arith.mulf %129, %131 : vector<2x256xf32>
      %133 = arith.addf %128, %132 : vector<2x256xf32>
      %c2_i32 = arith.constant 2 : i32
      %134 = tpu.dynamic_rotate %22 by %c2_i32 dim 1 : vector<2x256xf32>, i32 -> vector<2x256xf32>
      %c22 = arith.constant 22 : index
      %c0_57 = arith.constant 0 : index
      %c0_58 = arith.constant 0 : index
      %135 = vector.load %arg2[%c22, %c0_57, %c0_58] : memref<49x2x256xf32, #tpu.memory_space<vmem>>, vector<1x2x256xf32>
      %136 = vector.shape_cast %135 : vector<1x2x256xf32> to vector<2x256xf32>
      %137 = arith.mulf %134, %136 : vector<2x256xf32>
      %138 = arith.addf %133, %137 : vector<2x256xf32>
      %c1_i32 = arith.constant 1 : i32
      %139 = tpu.dynamic_rotate %22 by %c1_i32 dim 1 : vector<2x256xf32>, i32 -> vector<2x256xf32>
      %c23 = arith.constant 23 : index
      %c0_59 = arith.constant 0 : index
      %c0_60 = arith.constant 0 : index
      %140 = vector.load %arg2[%c23, %c0_59, %c0_60] : memref<49x2x256xf32, #tpu.memory_space<vmem>>, vector<1x2x256xf32>
      %141 = vector.shape_cast %140 : vector<1x2x256xf32> to vector<2x256xf32>
      %142 = arith.mulf %139, %141 : vector<2x256xf32>
      %143 = arith.addf %138, %142 : vector<2x256xf32>
      %c24 = arith.constant 24 : index
      %c0_61 = arith.constant 0 : index
      %c0_62 = arith.constant 0 : index
      %144 = vector.load %arg2[%c24, %c0_61, %c0_62] : memref<49x2x256xf32, #tpu.memory_space<vmem>>, vector<1x2x256xf32>
      %145 = vector.shape_cast %144 : vector<1x2x256xf32> to vector<2x256xf32>
      %146 = arith.mulf %22, %145 : vector<2x256xf32>
      %147 = arith.addf %143, %146 : vector<2x256xf32>
      %c255_i32 = arith.constant 255 : i32
      %148 = tpu.dynamic_rotate %22 by %c255_i32 dim 1 : vector<2x256xf32>, i32 -> vector<2x256xf32>
      %c25 = arith.constant 25 : index
      %c0_63 = arith.constant 0 : index
      %c0_64 = arith.constant 0 : index
      %149 = vector.load %arg2[%c25, %c0_63, %c0_64] : memref<49x2x256xf32, #tpu.memory_space<vmem>>, vector<1x2x256xf32>
      %150 = vector.shape_cast %149 : vector<1x2x256xf32> to vector<2x256xf32>
      %151 = arith.mulf %148, %150 : vector<2x256xf32>
      %152 = arith.addf %147, %151 : vector<2x256xf32>
      %c254_i32 = arith.constant 254 : i32
      %153 = tpu.dynamic_rotate %22 by %c254_i32 dim 1 : vector<2x256xf32>, i32 -> vector<2x256xf32>
      %c26 = arith.constant 26 : index
      %c0_65 = arith.constant 0 : index
      %c0_66 = arith.constant 0 : index
      %154 = vector.load %arg2[%c26, %c0_65, %c0_66] : memref<49x2x256xf32, #tpu.memory_space<vmem>>, vector<1x2x256xf32>
      %155 = vector.shape_cast %154 : vector<1x2x256xf32> to vector<2x256xf32>
      %156 = arith.mulf %153, %155 : vector<2x256xf32>
      %157 = arith.addf %152, %156 : vector<2x256xf32>
      %c253_i32 = arith.constant 253 : i32
      %158 = tpu.dynamic_rotate %22 by %c253_i32 dim 1 : vector<2x256xf32>, i32 -> vector<2x256xf32>
      %c27 = arith.constant 27 : index
      %c0_67 = arith.constant 0 : index
      %c0_68 = arith.constant 0 : index
      %159 = vector.load %arg2[%c27, %c0_67, %c0_68] : memref<49x2x256xf32, #tpu.memory_space<vmem>>, vector<1x2x256xf32>
      %160 = vector.shape_cast %159 : vector<1x2x256xf32> to vector<2x256xf32>
      %161 = arith.mulf %158, %160 : vector<2x256xf32>
      %162 = arith.addf %157, %161 : vector<2x256xf32>
      %c243_i32 = arith.constant 243 : i32
      %163 = tpu.dynamic_rotate %22 by %c243_i32 dim 1 : vector<2x256xf32>, i32 -> vector<2x256xf32>
      %c28 = arith.constant 28 : index
      %c0_69 = arith.constant 0 : index
      %c0_70 = arith.constant 0 : index
      %164 = vector.load %arg2[%c28, %c0_69, %c0_70] : memref<49x2x256xf32, #tpu.memory_space<vmem>>, vector<1x2x256xf32>
      %165 = vector.shape_cast %164 : vector<1x2x256xf32> to vector<2x256xf32>
      %166 = arith.mulf %163, %165 : vector<2x256xf32>
      %167 = arith.addf %162, %166 : vector<2x256xf32>
      %c242_i32 = arith.constant 242 : i32
      %168 = tpu.dynamic_rotate %22 by %c242_i32 dim 1 : vector<2x256xf32>, i32 -> vector<2x256xf32>
      %c29 = arith.constant 29 : index
      %c0_71 = arith.constant 0 : index
      %c0_72 = arith.constant 0 : index
      %169 = vector.load %arg2[%c29, %c0_71, %c0_72] : memref<49x2x256xf32, #tpu.memory_space<vmem>>, vector<1x2x256xf32>
      %170 = vector.shape_cast %169 : vector<1x2x256xf32> to vector<2x256xf32>
      %171 = arith.mulf %168, %170 : vector<2x256xf32>
      %172 = arith.addf %167, %171 : vector<2x256xf32>
      %c241_i32 = arith.constant 241 : i32
      %173 = tpu.dynamic_rotate %22 by %c241_i32 dim 1 : vector<2x256xf32>, i32 -> vector<2x256xf32>
      %c30 = arith.constant 30 : index
      %c0_73 = arith.constant 0 : index
      %c0_74 = arith.constant 0 : index
      %174 = vector.load %arg2[%c30, %c0_73, %c0_74] : memref<49x2x256xf32, #tpu.memory_space<vmem>>, vector<1x2x256xf32>
      %175 = vector.shape_cast %174 : vector<1x2x256xf32> to vector<2x256xf32>
      %176 = arith.mulf %173, %175 : vector<2x256xf32>
      %177 = arith.addf %172, %176 : vector<2x256xf32>
      %c240_i32 = arith.constant 240 : i32
      %178 = tpu.dynamic_rotate %22 by %c240_i32 dim 1 : vector<2x256xf32>, i32 -> vector<2x256xf32>
      %c31 = arith.constant 31 : index
      %c0_75 = arith.constant 0 : index
      %c0_76 = arith.constant 0 : index
      %179 = vector.load %arg2[%c31, %c0_75, %c0_76] : memref<49x2x256xf32, #tpu.memory_space<vmem>>, vector<1x2x256xf32>
      %180 = vector.shape_cast %179 : vector<1x2x256xf32> to vector<2x256xf32>
      %181 = arith.mulf %178, %180 : vector<2x256xf32>
      %182 = arith.addf %177, %181 : vector<2x256xf32>
      %c239_i32 = arith.constant 239 : i32
      %183 = tpu.dynamic_rotate %22 by %c239_i32 dim 1 : vector<2x256xf32>, i32 -> vector<2x256xf32>
      %c32 = arith.constant 32 : index
      %c0_77 = arith.constant 0 : index
      %c0_78 = arith.constant 0 : index
      %184 = vector.load %arg2[%c32, %c0_77, %c0_78] : memref<49x2x256xf32, #tpu.memory_space<vmem>>, vector<1x2x256xf32>
      %185 = vector.shape_cast %184 : vector<1x2x256xf32> to vector<2x256xf32>
      %186 = arith.mulf %183, %185 : vector<2x256xf32>
      %187 = arith.addf %182, %186 : vector<2x256xf32>
      %c238_i32 = arith.constant 238 : i32
      %188 = tpu.dynamic_rotate %22 by %c238_i32 dim 1 : vector<2x256xf32>, i32 -> vector<2x256xf32>
      %c33 = arith.constant 33 : index
      %c0_79 = arith.constant 0 : index
      %c0_80 = arith.constant 0 : index
      %189 = vector.load %arg2[%c33, %c0_79, %c0_80] : memref<49x2x256xf32, #tpu.memory_space<vmem>>, vector<1x2x256xf32>
      %190 = vector.shape_cast %189 : vector<1x2x256xf32> to vector<2x256xf32>
      %191 = arith.mulf %188, %190 : vector<2x256xf32>
      %192 = arith.addf %187, %191 : vector<2x256xf32>
      %c237_i32 = arith.constant 237 : i32
      %193 = tpu.dynamic_rotate %22 by %c237_i32 dim 1 : vector<2x256xf32>, i32 -> vector<2x256xf32>
      %c34 = arith.constant 34 : index
      %c0_81 = arith.constant 0 : index
      %c0_82 = arith.constant 0 : index
      %194 = vector.load %arg2[%c34, %c0_81, %c0_82] : memref<49x2x256xf32, #tpu.memory_space<vmem>>, vector<1x2x256xf32>
      %195 = vector.shape_cast %194 : vector<1x2x256xf32> to vector<2x256xf32>
      %196 = arith.mulf %193, %195 : vector<2x256xf32>
      %197 = arith.addf %192, %196 : vector<2x256xf32>
      %c227_i32 = arith.constant 227 : i32
      %198 = tpu.dynamic_rotate %22 by %c227_i32 dim 1 : vector<2x256xf32>, i32 -> vector<2x256xf32>
      %c35 = arith.constant 35 : index
      %c0_83 = arith.constant 0 : index
      %c0_84 = arith.constant 0 : index
      %199 = vector.load %arg2[%c35, %c0_83, %c0_84] : memref<49x2x256xf32, #tpu.memory_space<vmem>>, vector<1x2x256xf32>
      %200 = vector.shape_cast %199 : vector<1x2x256xf32> to vector<2x256xf32>
      %201 = arith.mulf %198, %200 : vector<2x256xf32>
      %202 = arith.addf %197, %201 : vector<2x256xf32>
      %c226_i32 = arith.constant 226 : i32
      %203 = tpu.dynamic_rotate %22 by %c226_i32 dim 1 : vector<2x256xf32>, i32 -> vector<2x256xf32>
      %c36 = arith.constant 36 : index
      %c0_85 = arith.constant 0 : index
      %c0_86 = arith.constant 0 : index
      %204 = vector.load %arg2[%c36, %c0_85, %c0_86] : memref<49x2x256xf32, #tpu.memory_space<vmem>>, vector<1x2x256xf32>
      %205 = vector.shape_cast %204 : vector<1x2x256xf32> to vector<2x256xf32>
      %206 = arith.mulf %203, %205 : vector<2x256xf32>
      %207 = arith.addf %202, %206 : vector<2x256xf32>
      %c225_i32 = arith.constant 225 : i32
      %208 = tpu.dynamic_rotate %22 by %c225_i32 dim 1 : vector<2x256xf32>, i32 -> vector<2x256xf32>
      %c37 = arith.constant 37 : index
      %c0_87 = arith.constant 0 : index
      %c0_88 = arith.constant 0 : index
      %209 = vector.load %arg2[%c37, %c0_87, %c0_88] : memref<49x2x256xf32, #tpu.memory_space<vmem>>, vector<1x2x256xf32>
      %210 = vector.shape_cast %209 : vector<1x2x256xf32> to vector<2x256xf32>
      %211 = arith.mulf %208, %210 : vector<2x256xf32>
      %212 = arith.addf %207, %211 : vector<2x256xf32>
      %c224_i32 = arith.constant 224 : i32
      %213 = tpu.dynamic_rotate %22 by %c224_i32 dim 1 : vector<2x256xf32>, i32 -> vector<2x256xf32>
      %c38 = arith.constant 38 : index
      %c0_89 = arith.constant 0 : index
      %c0_90 = arith.constant 0 : index
      %214 = vector.load %arg2[%c38, %c0_89, %c0_90] : memref<49x2x256xf32, #tpu.memory_space<vmem>>, vector<1x2x256xf32>
      %215 = vector.shape_cast %214 : vector<1x2x256xf32> to vector<2x256xf32>
      %216 = arith.mulf %213, %215 : vector<2x256xf32>
      %217 = arith.addf %212, %216 : vector<2x256xf32>
      %c223_i32 = arith.constant 223 : i32
      %218 = tpu.dynamic_rotate %22 by %c223_i32 dim 1 : vector<2x256xf32>, i32 -> vector<2x256xf32>
      %c39 = arith.constant 39 : index
      %c0_91 = arith.constant 0 : index
      %c0_92 = arith.constant 0 : index
      %219 = vector.load %arg2[%c39, %c0_91, %c0_92] : memref<49x2x256xf32, #tpu.memory_space<vmem>>, vector<1x2x256xf32>
      %220 = vector.shape_cast %219 : vector<1x2x256xf32> to vector<2x256xf32>
      %221 = arith.mulf %218, %220 : vector<2x256xf32>
      %222 = arith.addf %217, %221 : vector<2x256xf32>
      %c222_i32 = arith.constant 222 : i32
      %223 = tpu.dynamic_rotate %22 by %c222_i32 dim 1 : vector<2x256xf32>, i32 -> vector<2x256xf32>
      %c40 = arith.constant 40 : index
      %c0_93 = arith.constant 0 : index
      %c0_94 = arith.constant 0 : index
      %224 = vector.load %arg2[%c40, %c0_93, %c0_94] : memref<49x2x256xf32, #tpu.memory_space<vmem>>, vector<1x2x256xf32>
      %225 = vector.shape_cast %224 : vector<1x2x256xf32> to vector<2x256xf32>
      %226 = arith.mulf %223, %225 : vector<2x256xf32>
      %227 = arith.addf %222, %226 : vector<2x256xf32>
      %c221_i32 = arith.constant 221 : i32
      %228 = tpu.dynamic_rotate %22 by %c221_i32 dim 1 : vector<2x256xf32>, i32 -> vector<2x256xf32>
      %c41 = arith.constant 41 : index
      %c0_95 = arith.constant 0 : index
      %c0_96 = arith.constant 0 : index
      %229 = vector.load %arg2[%c41, %c0_95, %c0_96] : memref<49x2x256xf32, #tpu.memory_space<vmem>>, vector<1x2x256xf32>
      %230 = vector.shape_cast %229 : vector<1x2x256xf32> to vector<2x256xf32>
      %231 = arith.mulf %228, %230 : vector<2x256xf32>
      %232 = arith.addf %227, %231 : vector<2x256xf32>
      %c211_i32 = arith.constant 211 : i32
      %233 = tpu.dynamic_rotate %22 by %c211_i32 dim 1 : vector<2x256xf32>, i32 -> vector<2x256xf32>
      %c42 = arith.constant 42 : index
      %c0_97 = arith.constant 0 : index
      %c0_98 = arith.constant 0 : index
      %234 = vector.load %arg2[%c42, %c0_97, %c0_98] : memref<49x2x256xf32, #tpu.memory_space<vmem>>, vector<1x2x256xf32>
      %235 = vector.shape_cast %234 : vector<1x2x256xf32> to vector<2x256xf32>
      %236 = arith.mulf %233, %235 : vector<2x256xf32>
      %237 = arith.addf %232, %236 : vector<2x256xf32>
      %c210_i32 = arith.constant 210 : i32
      %238 = tpu.dynamic_rotate %22 by %c210_i32 dim 1 : vector<2x256xf32>, i32 -> vector<2x256xf32>
      %c43 = arith.constant 43 : index
      %c0_99 = arith.constant 0 : index
      %c0_100 = arith.constant 0 : index
      %239 = vector.load %arg2[%c43, %c0_99, %c0_100] : memref<49x2x256xf32, #tpu.memory_space<vmem>>, vector<1x2x256xf32>
      %240 = vector.shape_cast %239 : vector<1x2x256xf32> to vector<2x256xf32>
      %241 = arith.mulf %238, %240 : vector<2x256xf32>
      %242 = arith.addf %237, %241 : vector<2x256xf32>
      %c209_i32 = arith.constant 209 : i32
      %243 = tpu.dynamic_rotate %22 by %c209_i32 dim 1 : vector<2x256xf32>, i32 -> vector<2x256xf32>
      %c44 = arith.constant 44 : index
      %c0_101 = arith.constant 0 : index
      %c0_102 = arith.constant 0 : index
      %244 = vector.load %arg2[%c44, %c0_101, %c0_102] : memref<49x2x256xf32, #tpu.memory_space<vmem>>, vector<1x2x256xf32>
      %245 = vector.shape_cast %244 : vector<1x2x256xf32> to vector<2x256xf32>
      %246 = arith.mulf %243, %245 : vector<2x256xf32>
      %247 = arith.addf %242, %246 : vector<2x256xf32>
      %c208_i32 = arith.constant 208 : i32
      %248 = tpu.dynamic_rotate %22 by %c208_i32 dim 1 : vector<2x256xf32>, i32 -> vector<2x256xf32>
      %c45 = arith.constant 45 : index
      %c0_103 = arith.constant 0 : index
      %c0_104 = arith.constant 0 : index
      %249 = vector.load %arg2[%c45, %c0_103, %c0_104] : memref<49x2x256xf32, #tpu.memory_space<vmem>>, vector<1x2x256xf32>
      %250 = vector.shape_cast %249 : vector<1x2x256xf32> to vector<2x256xf32>
      %251 = arith.mulf %248, %250 : vector<2x256xf32>
      %252 = arith.addf %247, %251 : vector<2x256xf32>
      %c207_i32 = arith.constant 207 : i32
      %253 = tpu.dynamic_rotate %22 by %c207_i32 dim 1 : vector<2x256xf32>, i32 -> vector<2x256xf32>
      %c46 = arith.constant 46 : index
      %c0_105 = arith.constant 0 : index
      %c0_106 = arith.constant 0 : index
      %254 = vector.load %arg2[%c46, %c0_105, %c0_106] : memref<49x2x256xf32, #tpu.memory_space<vmem>>, vector<1x2x256xf32>
      %255 = vector.shape_cast %254 : vector<1x2x256xf32> to vector<2x256xf32>
      %256 = arith.mulf %253, %255 : vector<2x256xf32>
      %257 = arith.addf %252, %256 : vector<2x256xf32>
      %c206_i32 = arith.constant 206 : i32
      %258 = tpu.dynamic_rotate %22 by %c206_i32 dim 1 : vector<2x256xf32>, i32 -> vector<2x256xf32>
      %c47 = arith.constant 47 : index
      %c0_107 = arith.constant 0 : index
      %c0_108 = arith.constant 0 : index
      %259 = vector.load %arg2[%c47, %c0_107, %c0_108] : memref<49x2x256xf32, #tpu.memory_space<vmem>>, vector<1x2x256xf32>
      %260 = vector.shape_cast %259 : vector<1x2x256xf32> to vector<2x256xf32>
      %261 = arith.mulf %258, %260 : vector<2x256xf32>
      %262 = arith.addf %257, %261 : vector<2x256xf32>
      %c205_i32 = arith.constant 205 : i32
      %263 = tpu.dynamic_rotate %22 by %c205_i32 dim 1 : vector<2x256xf32>, i32 -> vector<2x256xf32>
      %c48 = arith.constant 48 : index
      %c0_109 = arith.constant 0 : index
      %c0_110 = arith.constant 0 : index
      %264 = vector.load %arg2[%c48, %c0_109, %c0_110] : memref<49x2x256xf32, #tpu.memory_space<vmem>>, vector<1x2x256xf32>
      %265 = vector.shape_cast %264 : vector<1x2x256xf32> to vector<2x256xf32>
      %266 = arith.mulf %263, %265 : vector<2x256xf32>
      %267 = arith.addf %262, %266 : vector<2x256xf32>
      %268 = vector.extract_strided_slice %267 {offsets = [0, 0], sizes = [1, 256], strides = [1, 1]} : vector<2x256xf32> to vector<1x256xf32>
      %269 = vector.extract_strided_slice %267 {offsets = [1, 0], sizes = [1, 256], strides = [1, 1]} : vector<2x256xf32> to vector<1x256xf32>
      %270 = arith.addf %268, %269 : vector<1x256xf32>
      %271 = arith.negf %270 : vector<1x256xf32>
      %272 = math.exp %271 : vector<1x256xf32>
      %cst_111 = arith.constant 1.000000e+00 : f32
      %273 = vector.broadcast %cst_111 : f32 to vector<1x256xf32>
      %274 = arith.addf %273, %272 : vector<1x256xf32>
      %275 = arith.divf %273, %274 : vector<1x256xf32>
      %c0_112 = arith.constant 0 : index
      %c0_113 = arith.constant 0 : index
      %c0_114 = arith.constant 0 : index
      %276 = vector.load %arg4[%c0_112, %c0_113, %c0_114] : memref<1x1x256xf32, #tpu.memory_space<vmem>>, vector<1x1x256xf32>
      %277 = vector.shape_cast %276 : vector<1x1x256xf32> to vector<1x256xf32>
      %278 = vector.shape_cast %275 : vector<1x256xf32> to vector<1x1x256xf32>
      tpu.vector_store %arg4[%c0_112, %c0_113, %c0_114], %278 {strides = array<i32>} : memref<1x1x256xf32, #tpu.memory_space<vmem>>, vector<1x1x256xf32>,
    } else {
    }
    return
  }
  func.func @transform_0(%arg0: i32, %arg1: i32) -> (i32, i32, i32) {
    %c0_i32 = arith.constant 0 : i32
    %c0_i32_0 = arith.constant 0 : i32
    %c0_i32_1 = arith.constant 0 : i32
    %c0_i32_2 = arith.constant 0 : i32
    return %c0_i32, %c0_i32_0, %c0_i32_1 : i32, i32, i32
  }
  func.func @transform_1(%arg0: i32, %arg1: i32) -> (i32, i32, i32) {
    %c0_i32 = arith.constant 0 : i32
    %c0_i32_0 = arith.constant 0 : i32
    return %arg0, %arg1, %c0_i32 : i32, i32, i32
  }
  func.func @transform_2(%arg0: i32, %arg1: i32) -> (i32, i32, i32) {
    %c0_i32 = arith.constant 0 : i32
    %c0_i32_0 = arith.constant 0 : i32
    %c0_i32_1 = arith.constant 0 : i32
    return %arg0, %c0_i32, %c0_i32_0 : i32, i32, i32
  }
}

</mosaic_0001>

<llo_original>
// kernel: tpu_custom_call.1
$region0: #{tpu_custom_call.1}
  #allocation0 [shape = 'u32[]', space=smem, size = 0x4, offset = 0x4, fixed_abs, tag = 'smem constant byte address 0x4 - core index']
  #allocation1 [shape = 'u32[144,128]{1,0:T(1,128)}', space=vmem, size = 0x12000, scoped, tag = 'internal scratch']
  #allocation2 [shape = 'f32[2,256]{1,0:T(2,128)}', space=vmem, size = 0x800, scoped, tag = 'scratch operand']
  #allocation3 [shape = 'f32[2,256]{1,0:T(2,128)}', space=vmem, size = 0x800, scoped, tag = 'scratch operand']
  %s0 = inlined_call_operand.hbm [shape: f32[49,2,256], index: 0, kind: input, shape index: {}]
  %s1 = inlined_call_operand.hbm [shape: f32[2,8,256], index: 1, kind: input, shape index: {}]
  %s2 = inlined_call_operand.hbm [shape: f32[2,1,256], index: 2, kind: output, shape index: {}]
  %s3 = sld [smem:[#allocation0]]
  $region61: #{tpu_custom_call.1} parent=0
    _
  %s5 = ssub.s32 1, %s3
  %s6 = scalar_select 0, %s5, %s3
  $region1: #{tpu_custom_call.1} parent=0
    #allocation4 [shape = 'u8[100352]{0}', space=vmem, size = 0x18800, scoped, tag = 'input window, operand 0, single buffered']
    #allocation5 [shape = 's32[2]{0}', space=sflag, size = 0x8, scoped, tag = 'scoped memory for tpu_custom_call.1']
    #allocation6 [shape = 's32[2]{0}', space=sflag, size = 0x8, scoped, tag = 'scoped memory for tpu_custom_call.1']
    #allocation7 [shape = 'u8[16384]{0}', space=vmem, size = 0x4000, scoped, tag = 'input window, operand 1']
    #allocation8 [shape = 's32[2]{0}', space=sflag, size = 0x8, scoped, tag = 'scoped memory for tpu_custom_call.1']
    #allocation9 [shape = 'u8[2048]{0}', space=vmem, size = 0x800, scoped, tag = 'output window, operand 0']
    %7 = vsyncpa [#allocation5], 0
    %8 = vsyncpa [#allocation8], 0
    %s9 = scalar_lea.sflag [#allocation8], 1
    %10 = vsyncpa %s9, 0
    %11 = vsyncpa [#allocation6], 0
    %s12 = scalar_lea.sflag [#allocation6], 1
    %13 = vsyncpa %s12, 0
    loop: start=0, step=1, limit=4
    $region2: #{tpu_custom_call.1} parent=1 // loop_pre_header
      _
    $region3: #{tpu_custom_call.1} parent=1 // loop_header
      %s15 = sphi 0, %s19
      %p16 = scmp.ge.s32.totalorder %s15, 4
      %s22 = sphi 0, %s34
      %s23 = sphi 0, %s30
      %s24 = sphi 0, %s22
      %s25 = sphi 0, %s23
      %s26 = sphi 0, %s24
      %s27 = sphi 0, %s25
      %s35 = sphi 0, %s35
      %s37 = sphi 0, %s35
      %s38 = sphi 0, %s37
      %s52 = sphi 0, %s38
      %s60 = sphi 0, %s62
      %s63 = sphi 0, %s60
      %s64 = sphi 0, %s63
      %s80 = sphi 0, %s64
      %s86 = sphi 0, %s88
      %s89 = sphi 0, %s86
      %s90 = sphi 0, %s89
      %s106 = sphi 0, %s90
    $region4: #{tpu_custom_call.1} parent=1 // loop_header_branch
      %18 = sbr.rel (%p16) target = $region8
    $region5: #{tpu_custom_call.1} parent=1 // loop_body
      %s20 = ssub.s32 %s15, 1
      %s21 = ssub.s32 %s15, 2
      %s28 = sadd.s32 1, %s23
      %p29 = scmp.ge.s32.totalorder %s28, 1
      %s30 = scalar_select %p29, 0, %s28
      %s31 = sadd.s32 1, %s22
      %s32 = scalar_select %p29, %s31, %s22
      %p33 = scmp.ge.s32.totalorder %s32, 2
      %s34 = scalar_select %p33, 0, %s32
      %s36 = sadd.s32 %s35, 1
      %p39 = scmp.eq.s32.totalorder %s15, 1
      %p40 = scmp.ne.s32.totalorder %s35, %s37
      %p41 = scmp.eq.s32.totalorder %s15, 0
      %p42 = por %p40, %p41
      %p43 = scmp.ne.s32.totalorder %s35, %s37
      %p44 = scmp.eq.s32.totalorder %s20, 1
      %p45 = por %p43, %p44
      %p46 = scmp.ne.s32.totalorder %s37, %s38
      %p47 = scmp.eq.s32.totalorder %s20, 0
      %p48 = por %p46, %p47
      %p49 = scmp.ne.s32.totalorder %s37, %s38
      %p50 = scmp.eq.s32.totalorder %s21, 1
      %p51 = por %p49, %p50
      %p53 = scmp.ne.s32.totalorder %s38, %s52
      %p54 = scmp.eq.s32.totalorder %s21, 0
      %p55 = por %p53, %p54
      %s56 = ssub.s32 %s22, %s34
      %s57 = ssub.s32 %s23, %s30
      %s58 = sor.u32 %s56, %s57
      %p59 = scmp.eq.s32.totalorder %s58, 0
      %s61 = sadd.s32 %s60, 1
      %s62 = scalar_select %p59, %s60, %s61
      %p65 = pneg %p59
      %p66 = scmp.eq.s32.totalorder %s15, 1
      %p67 = por %p65, %p66
      %p68 = scmp.ne.s32.totalorder %s60, %s63
      %p69 = scmp.eq.s32.totalorder %s15, 0
      %p70 = por %p68, %p69
      %p71 = scmp.ne.s32.totalorder %s60, %s63
      %p72 = scmp.eq.s32.totalorder %s20, 1
      %p73 = por %p71, %p72
      %p74 = scmp.ne.s32.totalorder %s63, %s64
      %p75 = scmp.eq.s32.totalorder %s20, 0
      %p76 = por %p74, %p75
      %p77 = scmp.ne.s32.totalorder %s63, %s64
      %p78 = scmp.eq.s32.totalorder %s21, 1
      %p79 = por %p77, %p78
      %p81 = scmp.ne.s32.totalorder %s64, %s80
      %p82 = scmp.eq.s32.totalorder %s21, 0
      %p83 = por %p81, %p82
      %s84 = ssub.s32 %s22, %s34
      %p85 = scmp.eq.s32.totalorder %s84, 0
      %s87 = sadd.s32 %s86, 1
      %s88 = scalar_select %p85, %s86, %s87
      %p91 = pneg %p85
      %p92 = scmp.eq.s32.totalorder %s15, 1
      %p93 = por %p91, %p92
      %p94 = scmp.ne.s32.totalorder %s86, %s89
      %p95 = scmp.eq.s32.totalorder %s15, 0
      %p96 = por %p94, %p95
      %p97 = scmp.ne.s32.totalorder %s86, %s89
      %p98 = scmp.eq.s32.totalorder %s20, 1
      %p99 = por %p97, %p98
      %p100 = scmp.ne.s32.totalorder %s89, %s90
      %p101 = scmp.eq.s32.totalorder %s20, 0
      %p102 = por %p100, %p101
      %p103 = scmp.ne.s32.totalorder %s89, %s90
      %p104 = scmp.eq.s32.totalorder %s21, 1
      %p105 = por %p103, %p104
      %p107 = scmp.ne.s32.totalorder %s90, %s106
      %p108 = scmp.eq.s32.totalorder %s21, 0
      %p109 = por %p107, %p108
      %p110 = scmp.le.s32.totalorder 1, %s15
      %p111 = scmp.lt.s32.totalorder %s15, 3
      %p112 = pnand %p110, %p111
      %p113 = pneg %p112
      // Predicated region
      $region9: #{tpu_custom_call.1} parent=5 // pred_check
        _
      $region10: #{tpu_custom_call.1} parent=5 // pred_check_branch
        %115 = sbr.rel (%p112) target = $region12
      $region11: #{tpu_custom_call.1} parent=5 // pred_region
        %s116 = ssub.s32 %s15, 1
        // Predicated region
        $region13: #{tpu_custom_call.1} parent=11 // pred_check
          %p117 = pneg %p48
        $region14: #{tpu_custom_call.1} parent=11 // pred_check_branch
          %119 = sbr.rel (%p117) target = $region16
        $region15: #{tpu_custom_call.1} parent=11 // pred_region
          %s121 = ssub.s32 3136, 3136
          %122 = vsyncadd [#allocation5], %s121
          %s123 = sshll.u32 [#allocation4], 4
          %s124 = int_to_ptr.vmem [resolvable:$true] %s123
          %129 = dma.hbm_to_vmem [thread:$0]  %s0, 3136, %s124, [#allocation5], 64, 64, 4
        $region16: #{tpu_custom_call.1} parent=11 // pred_fallthru
          _
      $region12: #{tpu_custom_call.1} parent=5 // pred_fallthru
        _
      %p130 = scmp.lt.s32.totalorder %s15, 2
      // Predicated region
      $region17: #{tpu_custom_call.1} parent=5 // pred_check
        %p131 = pneg %p130
      $region18: #{tpu_custom_call.1} parent=5 // pred_check_branch
        %133 = sbr.rel (%p131) target = $region20
      $region19: #{tpu_custom_call.1} parent=5 // pred_region
        // Predicated region
        $region21: #{tpu_custom_call.1} parent=19 // pred_check
          %p134 = pneg %p70
        $region22: #{tpu_custom_call.1} parent=19 // pred_check_branch
          %136 = sbr.rel (%p134) target = $region24
        $region23: #{tpu_custom_call.1} parent=19 // pred_region
          %s137 = sand.u32 %s60, 1
          %s138 = scalar_lea.sflag [#allocation8], %s137
          %s139 = sand.u32 %s60, 1
          %s140 = smul.addr %s139, 16
          %s141 = scalar_lea.vmem [#allocation7], %s140
          %s143 = ssub.s32 256, 256
          %144 = vsyncadd %s138, %s143
          %s145 = smul.addr %s23, 2
          %s146 = smul.addr %s22, 2
          %s147 = sadd.s32 %s145, %s146
          %s148 = smul.addr %s147, 128
          %s149 = scalar_lea.hbm %s1, %s148
          %s151 = sshll.u32 %s141, 4
          %s152 = int_to_ptr.vmem [resolvable:$true] %s151
          %154 = dma.hbm_to_vmem [thread:$0]  %s149, 256, %s152, %s138
        $region24: #{tpu_custom_call.1} parent=19 // pred_fallthru
          _
      $region20: #{tpu_custom_call.1} parent=5 // pred_fallthru
        _
      %p155 = scmp.le.s32.totalorder 1, %s15
      %p156 = scmp.lt.s32.totalorder %s15, 3
      %p157 = pnand %p155, %p156
      %p158 = pneg %p157
      // Predicated region
      $region25: #{tpu_custom_call.1} parent=5 // pred_check
        _
      $region26: #{tpu_custom_call.1} parent=5 // pred_check_branch
        %160 = sbr.rel (%p157) target = $region28
      $region27: #{tpu_custom_call.1} parent=5 // pred_region
        %s161 = ssub.s32 %s15, 1
        // Predicated region
        $region29: #{tpu_custom_call.1} parent=27 // pred_check
          %p162 = pneg %p48
        $region30: #{tpu_custom_call.1} parent=27 // pred_check_branch
          %164 = sbr.rel (%p162) target = $region32
        $region31: #{tpu_custom_call.1} parent=27 // pred_region
          %165 = dma.done [#allocation5], 3136
        $region32: #{tpu_custom_call.1} parent=27 // pred_fallthru
          _
        %s166 = sand.u32 %s63, 1
        %s167 = scalar_lea.sflag [#allocation8], %s166
        %s168 = sand.u32 %s63, 1
        %s169 = smul.addr %s168, 16
        %s170 = scalar_lea.vmem [#allocation7], %s169
        // Predicated region
        $region33: #{tpu_custom_call.1} parent=27 // pred_check
          %p171 = pneg %p76
        $region34: #{tpu_custom_call.1} parent=27 // pred_check_branch
          %173 = sbr.rel (%p171) target = $region36
        $region35: #{tpu_custom_call.1} parent=27 // pred_region
          %174 = dma.done %s167, 256
        $region36: #{tpu_custom_call.1} parent=27 // pred_fallthru
          _
        %p175 = pneg %p48
        %p176 = pneg %p45
        %s177 = sand.u32 %s63, 1
        %s178 = scalar_lea.sflag [#allocation8], %s177
        %s179 = sand.u32 %s63, 1
        %s180 = smul.addr %s179, 16
        %s181 = scalar_lea.vmem [#allocation7], %s180
        %p182 = pneg %p76
        %p183 = pneg %p73
        %p184 = pneg %p102
        %p185 = pneg %p99
        %s186 = sand.u32 %s89, 1
        %s187 = scalar_lea.sflag [#allocation6], %s186
        %s188 = sand.u32 %s89, 1
        %s189 = smul.addr %s188, 2
        %s190 = scalar_lea.vmem [#allocation9], %s189
        %v191 = vld [vmem:[%s170] sm:$0xff]
        %v192 = vld [vmem:[%s170 + $0x8] sm:$0xff]
        %v193 = vrot.slane %v191, 4
        %v194 = vadd.f32 %v191, %v193
        %v195 = vrot.slane %v194, 2
        %v196 = vadd.f32 %v194, %v195
        %v197 = vrot.slane %v196, 1
        %v198 = vadd.f32 %v196, %v197
        %v199 = vrot.slane %v192, 4
        %v200 = vadd.f32 %v192, %v199
        %v201 = vrot.slane %v200, 2
        %v202 = vadd.f32 %v200, %v201
        %v203 = vrot.slane %v202, 1
        %v204 = vadd.f32 %v202, %v203
        %s205 = smul.u32 %s25, 8
        %s206 = ssub.s32 4, %s205
        %v207 = vlaneseq
        %v208 = vshrl.u32 %v207, 7
        %v209 = vstv %s206
        %vm210 = vcmp.lt.s32.totalorder %v208, %v209
        %v211 = vsel %vm210, %v191, -inf
        %v212 = vsel %vm210, %v192, -inf
        %v213 = vrot.slane %v211, 4
        %v214 = vmax.f32 %v211, %v213
        %v215 = vrot.slane %v214, 2
        %v216 = vmax.f32 %v214, %v215
        %v217 = vrot.slane %v216, 1
        %v218 = vmax.f32 %v216, %v217
        %v219 = vrot.slane %v212, 4
        %v220 = vmax.f32 %v212, %v219
        %v221 = vrot.slane %v220, 2
        %v222 = vmax.f32 %v220, %v221
        %v223 = vrot.slane %v222, 1
        %v224 = vmax.f32 %v222, %v223
        %p225 = scmp.eq.s32.totalorder %s25, 0
        // Predicated region
        $region37: #{tpu_custom_call.1} parent=27 // pred_check
          %p226 = pneg %p225
        $region38: #{tpu_custom_call.1} parent=27 // pred_check_branch
          %228 = sbr.rel (%p226) target = $region40
        $region39: #{tpu_custom_call.1} parent=27 // pred_region
          %v231 = vcombine.low %v198, %v204
          %v233 = vunpack.c.l.s4 1966171168
          %v234 = vunpack.c.0.s8 %v233
          %v235 = vlaneseq
          %v236 = vshrl.u32 %v235, 7
          %v237 = vsub.s32 %v234, %v236
          %v238 = vrot.slane %v231, %v237
          %v240 = vunpack.c.l.s4 1966171168
          %v241 = vunpack.c.0.s8 %v240
          %v242 = vlaneseq
          %v243 = vshrl.u32 %v242, 7
          %v244 = vsub.s32 %v241, %v243
          %v245 = vrot.slane %v238, %v244
          %v247 = vlaneseq
          %vm248 = vcmp.ge.s32.totalorder %v247, 0
          %vm249 = vcmp.lt.s32.totalorder %v247, 256
          %vm250 = vmand %vm248, %vm249
          %251 = vst.msk [vmem:[#allocation2] ss:$2 sm:$0x3] %vm250, %v245
          %v254 = vcombine.low %v218, %v224
          %v256 = vunpack.c.l.s4 1966171168
          %v257 = vunpack.c.0.s8 %v256
          %v258 = vlaneseq
          %v259 = vshrl.u32 %v258, 7
          %v260 = vsub.s32 %v257, %v259
          %v261 = vrot.slane %v254, %v260
          %v263 = vunpack.c.l.s4 1966171168
          %v264 = vunpack.c.0.s8 %v263
          %v265 = vlaneseq
          %v266 = vshrl.u32 %v265, 7
          %v267 = vsub.s32 %v264, %v266
          %v268 = vrot.slane %v261, %v267
          %s270 = scalar_lea.vmem [#allocation2], 1
          %271 = vst.msk [vmem:[%s270] ss:$2 sm:$0x3] %vm250, %v268
        $region40: #{tpu_custom_call.1} parent=27 // pred_fallthru
          _
        %p272 = scmp.gt.s32.totalorder %s25, 0
        // Predicated region
        $region41: #{tpu_custom_call.1} parent=27 // pred_check
          %p273 = pneg %p272
        $region42: #{tpu_custom_call.1} parent=27 // pred_check_branch
          %275 = sbr.rel (%p273) target = $region44
        $region43: #{tpu_custom_call.1} parent=27 // pred_region
          %v276 = vld [vmem:[#allocation2] ss:$2 sm:$0x3]
          %v279 = vcombine.low %v198, %v204
          %v281 = vunpack.c.l.s4 1966171168
          %v282 = vunpack.c.0.s8 %v281
          %v283 = vlaneseq
          %v284 = vshrl.u32 %v283, 7
          %v285 = vsub.s32 %v282, %v284
          %v286 = vrot.slane %v279, %v285
          %v288 = vunpack.c.l.s4 1966171168
          %v289 = vunpack.c.0.s8 %v288
          %v290 = vlaneseq
          %v291 = vshrl.u32 %v290, 7
          %v292 = vsub.s32 %v289, %v291
          %v293 = vrot.slane %v286, %v292
          %v295 = vadd.f32 %v276, %v293
          %v296 = vlaneseq
          %vm297 = vcmp.ge.s32.totalorder %v296, 0
          %vm298 = vcmp.lt.s32.totalorder %v296, 256
          %vm299 = vmand %vm297, %vm298
          %300 = vst.msk [vmem:[#allocation2] ss:$2 sm:$0x3] %vm299, %v295
          %s301 = scalar_lea.vmem [#allocation2], 1
          %v302 = vld [vmem:[%s301] ss:$2 sm:$0x3]
          %v305 = vcombine.low %v218, %v224
          %v307 = vunpack.c.l.s4 1966171168
          %v308 = vunpack.c.0.s8 %v307
          %v309 = vlaneseq
          %v310 = vshrl.u32 %v309, 7
          %v311 = vsub.s32 %v308, %v310
          %v312 = vrot.slane %v305, %v311
          %v314 = vunpack.c.l.s4 1966171168
          %v315 = vunpack.c.0.s8 %v314
          %v316 = vlaneseq
          %v317 = vshrl.u32 %v316, 7
          %v318 = vsub.s32 %v315, %v317
          %v319 = vrot.slane %v312, %v318
          %v321 = vmax.f32 %v302, %v319
          %322 = vst.msk [vmem:[%s301] ss:$2 sm:$0x3] %vm299, %v321
        $region44: #{tpu_custom_call.1} parent=27 // pred_fallthru
          _
        // Predicated region
        $region45: #{tpu_custom_call.1} parent=27 // pred_check
          %p323 = pneg %p225
        $region46: #{tpu_custom_call.1} parent=27 // pred_check_branch
          %325 = sbr.rel (%p323) target = $region48
        $region47: #{tpu_custom_call.1} parent=27 // pred_region
          %v326 = vld [vmem:[#allocation2] sm:$0xf]
          %v329 = vunpack.c.l.s4 1983009808
          %v330 = vunpack.c.0.s8 %v329
          %v331 = vlaneseq
          %v332 = vshrl.u32 %v331, 7
          %v333 = vsub.s32 %v330, %v332
          %v334 = vrot.slane %v326, %v333
          %v335 = vcombine.high %v334, %v334
          %338 = vrot.lane.b32.xlu0 %v334, 51
          %v339 = vpop.permute.xlu0 %338
          %340 = vrot.lane.b32.xlu0 %v335, 51
          %v341 = vpop.permute.xlu0 %340
          %v342 = vlaneseq
          %v343 = vand.u32 %v342, 127
          %vm344 = vcmp.lt.s32.totalorder %v343, 51
          %v345 = vsel %vm344, %v339, %v341
          %v346 = vsel %vm344, %v341, %v339
          %v347 = vld [vmem:[#allocation4] sm:$0xf]
          %v350 = vunpack.c.l.s4 1983009808
          %v351 = vunpack.c.0.s8 %v350
          %v352 = vlaneseq
          %v353 = vshrl.u32 %v352, 7
          %v354 = vsub.s32 %v351, %v353
          %v355 = vrot.slane %v347, %v354
          %v356 = vcombine.high %v355, %v355
          %v359 = vmul.f32 %v346, %v355
          %v360 = vmul.f32 %v345, %v356
          %v361 = vadd.f32 %v359, 0.0
          %v362 = vadd.f32 %v360, 0.0
          %363 = vrot.lane.b32.xlu0 %v334, 50
          %v364 = vpop.permute.xlu0 %363
          %365 = vrot.lane.b32.xlu0 %v335, 50
          %v366 = vpop.permute.xlu0 %365
          %vm367 = vcmp.lt.s32.totalorder %v343, 50
          %v368 = vsel %vm367, %v364, %v366
          %v369 = vsel %vm367, %v366, %v364
          %s370 = scalar_lea.vmem [#allocation4], 4
          %v371 = vld [vmem:[%s370] sm:$0xf]
          %v374 = vunpack.c.l.s4 1983009808
          %v375 = vunpack.c.0.s8 %v374
          %v376 = vlaneseq
          %v377 = vshrl.u32 %v376, 7
          %v378 = vsub.s32 %v375, %v377
          %v379 = vrot.slane %v371, %v378
          %v380 = vcombine.high %v379, %v379
          %v383 = vmul.f32 %v369, %v379
          %v384 = vmul.f32 %v368, %v380
          %v385 = vadd.f32 %v361, %v383
          %v386 = vadd.f32 %v362, %v384
          %387 = vrot.lane.b32.xlu0 %v334, 49
          %v388 = vpop.permute.xlu0 %387
          %389 = vrot.lane.b32.xlu0 %v335, 49
          %v390 = vpop.permute.xlu0 %389
          %vm391 = vcmp.lt.s32.totalorder %v343, 49
          %v392 = vsel %vm391, %v388, %v390
          %v393 = vsel %vm391, %v390, %v388
          %s394 = scalar_lea.vmem [#allocation4], 8
          %v395 = vld [vmem:[%s394] sm:$0xf]
          %v398 = vunpack.c.l.s4 1983009808
          %v399 = vunpack.c.0.s8 %v398
          %v400 = vlaneseq
          %v401 = vshrl.u32 %v400, 7
          %v402 = vsub.s32 %v399, %v401
          %v403 = vrot.slane %v395, %v402
          %v404 = vcombine.high %v403, %v403
          %v407 = vmul.f32 %v393, %v403
          %v408 = vmul.f32 %v392, %v404
          %v409 = vadd.f32 %v385, %v407
          %v410 = vadd.f32 %v386, %v408
          %411 = vrot.lane.b32.xlu0 %v334, 48
          %v412 = vpop.permute.xlu0 %411
          %413 = vrot.lane.b32.xlu0 %v335, 48
          %v414 = vpop.permute.xlu0 %413
          %vm415 = vcmp.lt.s32.totalorder %v343, 48
          %v416 = vsel %vm415, %v412, %v414
          %v417 = vsel %vm415, %v414, %v412
          %s418 = scalar_lea.vmem [#allocation4], 12
          %v419 = vld [vmem:[%s418] sm:$0xf]
          %v422 = vunpack.c.l.s4 1983009808
          %v423 = vunpack.c.0.s8 %v422
          %v424 = vlaneseq
          %v425 = vshrl.u32 %v424, 7
          %v426 = vsub.s32 %v423, %v425
          %v427 = vrot.slane %v419, %v426
          %v428 = vcombine.high %v427, %v427
          %v431 = vmul.f32 %v417, %v427
          %v432 = vmul.f32 %v416, %v428
          %v433 = vadd.f32 %v409, %v431
          %v434 = vadd.f32 %v410, %v432
          %435 = vrot.lane.b32.xlu0 %v334, 47
          %v436 = vpop.permute.xlu0 %435
          %437 = vrot.lane.b32.xlu0 %v335, 47
          %v438 = vpop.permute.xlu0 %437
          %vm439 = vcmp.lt.s32.totalorder %v343, 47
          %v440 = vsel %vm439, %v436, %v438
          %v441 = vsel %vm439, %v438, %v436
          %s442 = scalar_lea.vmem [#allocation4], 16
          %v443 = vld [vmem:[%s442] sm:$0xf]
          %v446 = vunpack.c.l.s4 1983009808
          %v447 = vunpack.c.0.s8 %v446
          %v448 = vlaneseq
          %v449 = vshrl.u32 %v448, 7
          %v450 = vsub.s32 %v447, %v449
          %v451 = vrot.slane %v443, %v450
          %v452 = vcombine.high %v451, %v451
          %v455 = vmul.f32 %v441, %v451
          %v456 = vmul.f32 %v440, %v452
          %v457 = vadd.f32 %v433, %v455
          %v458 = vadd.f32 %v434, %v456
          %459 = vrot.lane.b32.xlu0 %v334, 46
          %v460 = vpop.permute.xlu0 %459
          %461 = vrot.lane.b32.xlu0 %v335, 46
          %v462 = vpop.permute.xlu0 %461
          %vm463 = vcmp.lt.s32.totalorder %v343, 46
          %v464 = vsel %vm463, %v460, %v462
          %v465 = vsel %vm463, %v462, %v460
          %s466 = scalar_lea.vmem [#allocation4], 20
          %v467 = vld [vmem:[%s466] sm:$0xf]
          %v470 = vunpack.c.l.s4 1983009808
          %v471 = vunpack.c.0.s8 %v470
          %v472 = vlaneseq
          %v473 = vshrl.u32 %v472, 7
          %v474 = vsub.s32 %v471, %v473
          %v475 = vrot.slane %v467, %v474
          %v476 = vcombine.high %v475, %v475
          %v479 = vmul.f32 %v465, %v475
          %v480 = vmul.f32 %v464, %v476
          %v481 = vadd.f32 %v457, %v479
          %v482 = vadd.f32 %v458, %v480
          %483 = vrot.lane.b32.xlu0 %v334, 45
          %v484 = vpop.permute.xlu0 %483
          %485 = vrot.lane.b32.xlu0 %v335, 45
          %v486 = vpop.permute.xlu0 %485
          %vm487 = vcmp.lt.s32.totalorder %v343, 45
          %v488 = vsel %vm487, %v484, %v486
          %v489 = vsel %vm487, %v486, %v484
          %s490 = scalar_lea.vmem [#allocation4], 24
          %v491 = vld [vmem:[%s490] sm:$0xf]
          %v494 = vunpack.c.l.s4 1983009808
          %v495 = vunpack.c.0.s8 %v494
          %v496 = vlaneseq
          %v497 = vshrl.u32 %v496, 7
          %v498 = vsub.s32 %v495, %v497
          %v499 = vrot.slane %v491, %v498
          %v500 = vcombine.high %v499, %v499
          %v503 = vmul.f32 %v489, %v499
          %v504 = vmul.f32 %v488, %v500
          %v505 = vadd.f32 %v481, %v503
          %v506 = vadd.f32 %v482, %v504
          %507 = vrot.lane.b32.xlu0 %v334, 35
          %v508 = vpop.permute.xlu0 %507
          %509 = vrot.lane.b32.xlu0 %v335, 35
          %v510 = vpop.permute.xlu0 %509
          %vm511 = vcmp.lt.s32.totalorder %v343, 35
          %v512 = vsel %vm511, %v508, %v510
          %v513 = vsel %vm511, %v510, %v508
          %s514 = scalar_lea.vmem [#allocation4], 28
          %v515 = vld [vmem:[%s514] sm:$0xf]
          %v518 = vunpack.c.l.s4 1983009808
          %v519 = vunpack.c.0.s8 %v518
          %v520 = vlaneseq
          %v521 = vshrl.u32 %v520, 7
          %v522 = vsub.s32 %v519, %v521
          %v523 = vrot.slane %v515, %v522
          %v524 = vcombine.high %v523, %v523
          %v527 = vmul.f32 %v513, %v523
          %v528 = vmul.f32 %v512, %v524
          %v529 = vadd.f32 %v505, %v527
          %v530 = vadd.f32 %v506, %v528
          %531 = vrot.lane.b32.xlu0 %v334, 34
          %v532 = vpop.permute.xlu0 %531
          %533 = vrot.lane.b32.xlu0 %v335, 34
          %v534 = vpop.permute.xlu0 %533
          %vm535 = vcmp.lt.s32.totalorder %v343, 34
          %v536 = vsel %vm535, %v532, %v534
          %v537 = vsel %vm535, %v534, %v532
          %s538 = scalar_lea.vmem [#allocation4], 32
          %v539 = vld [vmem:[%s538] sm:$0xf]
          %v542 = vunpack.c.l.s4 1983009808
          %v543 = vunpack.c.0.s8 %v542
          %v544 = vlaneseq
          %v545 = vshrl.u32 %v544, 7
          %v546 = vsub.s32 %v543, %v545
          %v547 = vrot.slane %v539, %v546
          %v548 = vcombine.high %v547, %v547
          %v551 = vmul.f32 %v537, %v547
          %v552 = vmul.f32 %v536, %v548
          %v553 = vadd.f32 %v529, %v551
          %v554 = vadd.f32 %v530, %v552
          %555 = vrot.lane.b32.xlu0 %v334, 33
          %v556 = vpop.permute.xlu0 %555
          %557 = vrot.lane.b32.xlu0 %v335, 33
          %v558 = vpop.permute.xlu0 %557
          %vm559 = vcmp.lt.s32.totalorder %v343, 33
          %v560 = vsel %vm559, %v556, %v558
          %v561 = vsel %vm559, %v558, %v556
          %s562 = scalar_lea.vmem [#allocation4], 36
          %v563 = vld [vmem:[%s562] sm:$0xf]
          %v566 = vunpack.c.l.s4 1983009808
          %v567 = vunpack.c.0.s8 %v566
          %v568 = vlaneseq
          %v569 = vshrl.u32 %v568, 7
          %v570 = vsub.s32 %v567, %v569
          %v571 = vrot.slane %v563, %v570
          %v572 = vcombine.high %v571, %v571
          %v575 = vmul.f32 %v561, %v571
          %v576 = vmul.f32 %v560, %v572
          %v577 = vadd.f32 %v553, %v575
          %v578 = vadd.f32 %v554, %v576
          %579 = vrot.lane.b32.xlu0 %v334, 32
          %v580 = vpop.permute.xlu0 %579
          %581 = vrot.lane.b32.xlu0 %v335, 32
          %v582 = vpop.permute.xlu0 %581
          %vm583 = vcmp.lt.s32.totalorder %v343, 32
          %v584 = vsel %vm583, %v580, %v582
          %v585 = vsel %vm583, %v582, %v580
          %s586 = scalar_lea.vmem [#allocation4], 40
          %v587 = vld [vmem:[%s586] sm:$0xf]
          %v590 = vunpack.c.l.s4 1983009808
          %v591 = vunpack.c.0.s8 %v590
          %v592 = vlaneseq
          %v593 = vshrl.u32 %v592, 7
          %v594 = vsub.s32 %v591, %v593
          %v595 = vrot.slane %v587, %v594
          %v596 = vcombine.high %v595, %v595
          %v599 = vmul.f32 %v585, %v595
          %v600 = vmul.f32 %v584, %v596
          %v601 = vadd.f32 %v577, %v599
          %v602 = vadd.f32 %v578, %v600
          %603 = vrot.lane.b32.xlu0 %v334, 31
          %v604 = vpop.permute.xlu0 %603
          %605 = vrot.lane.b32.xlu0 %v335, 31
          %v606 = vpop.permute.xlu0 %605
          %vm607 = vcmp.lt.s32.totalorder %v343, 31
          %v608 = vsel %vm607, %v604, %v606
          %v609 = vsel %vm607, %v606, %v604
          %s610 = scalar_lea.vmem [#allocation4], 44
          %v611 = vld [vmem:[%s610] sm:$0xf]
          %v614 = vunpack.c.l.s4 1983009808
          %v615 = vunpack.c.0.s8 %v614
          %v616 = vlaneseq
          %v617 = vshrl.u32 %v616, 7
          %v618 = vsub.s32 %v615, %v617
          %v619 = vrot.slane %v611, %v618
          %v620 = vcombine.high %v619, %v619
          %v623 = vmul.f32 %v609, %v619
          %v624 = vmul.f32 %v608, %v620
          %v625 = vadd.f32 %v601, %v623
          %v626 = vadd.f32 %v602, %v624
          %627 = vrot.lane.b32.xlu0 %v334, 30
          %v628 = vpop.permute.xlu0 %627
          %629 = vrot.lane.b32.xlu0 %v335, 30
          %v630 = vpop.permute.xlu0 %629
          %vm631 = vcmp.lt.s32.totalorder %v343, 30
          %v632 = vsel %vm631, %v628, %v630
          %v633 = vsel %vm631, %v630, %v628
          %s634 = scalar_lea.vmem [#allocation4], 48
          %v635 = vld [vmem:[%s634] sm:$0xf]
          %v638 = vunpack.c.l.s4 1983009808
          %v639 = vunpack.c.0.s8 %v638
          %v640 = vlaneseq
          %v641 = vshrl.u32 %v640, 7
          %v642 = vsub.s32 %v639, %v641
          %v643 = vrot.slane %v635, %v642
          %v644 = vcombine.high %v643, %v643
          %v647 = vmul.f32 %v633, %v643
          %v648 = vmul.f32 %v632, %v644
          %v649 = vadd.f32 %v625, %v647
          %v650 = vadd.f32 %v626, %v648
          %651 = vrot.lane.b32.xlu0 %v334, 29
          %v652 = vpop.permute.xlu0 %651
          %653 = vrot.lane.b32.xlu0 %v335, 29
          %v654 = vpop.permute.xlu0 %653
          %vm655 = vcmp.lt.s32.totalorder %v343, 29
          %v656 = vsel %vm655, %v652, %v654
          %v657 = vsel %vm655, %v654, %v652
          %s658 = scalar_lea.vmem [#allocation4], 52
          %v659 = vld [vmem:[%s658] sm:$0xf]
          %v662 = vunpack.c.l.s4 1983009808
          %v663 = vunpack.c.0.s8 %v662
          %v664 = vlaneseq
          %v665 = vshrl.u32 %v664, 7
          %v666 = vsub.s32 %v663, %v665
          %v667 = vrot.slane %v659, %v666
          %v668 = vcombine.high %v667, %v667
          %v671 = vmul.f32 %v657, %v667
          %v672 = vmul.f32 %v656, %v668
          %v673 = vadd.f32 %v649, %v671
          %v674 = vadd.f32 %v650, %v672
          %675 = vrot.lane.b32.xlu0 %v334, 19
          %v676 = vpop.permute.xlu0 %675
          %677 = vrot.lane.b32.xlu0 %v335, 19
          %v678 = vpop.permute.xlu0 %677
          %vm679 = vcmp.lt.s32.totalorder %v343, 19
          %v680 = vsel %vm679, %v676, %v678
          %v681 = vsel %vm679, %v678, %v676
          %s682 = scalar_lea.vmem [#allocation4], 56
          %v683 = vld [vmem:[%s682] sm:$0xf]
          %v686 = vunpack.c.l.s4 1983009808
          %v687 = vunpack.c.0.s8 %v686
          %v688 = vlaneseq
          %v689 = vshrl.u32 %v688, 7
          %v690 = vsub.s32 %v687, %v689
          %v691 = vrot.slane %v683, %v690
          %v692 = vcombine.high %v691, %v691
          %v695 = vmul.f32 %v681, %v691
          %v696 = vmul.f32 %v680, %v692
          %v697 = vadd.f32 %v673, %v695
          %v698 = vadd.f32 %v674, %v696
          %699 = vrot.lane.b32.xlu0 %v334, 18
          %v700 = vpop.permute.xlu0 %699
          %701 = vrot.lane.b32.xlu0 %v335, 18
          %v702 = vpop.permute.xlu0 %701
          %vm703 = vcmp.lt.s32.totalorder %v343, 18
          %v704 = vsel %vm703, %v700, %v702
          %v705 = vsel %vm703, %v702, %v700
          %s706 = scalar_lea.vmem [#allocation4], 60
          %v707 = vld [vmem:[%s706] sm:$0xf]
          %v710 = vunpack.c.l.s4 1983009808
          %v711 = vunpack.c.0.s8 %v710
          %v712 = vlaneseq
          %v713 = vshrl.u32 %v712, 7
          %v714 = vsub.s32 %v711, %v713
          %v715 = vrot.slane %v707, %v714
          %v716 = vcombine.high %v715, %v715
          %v719 = vmul.f32 %v705, %v715
          %v720 = vmul.f32 %v704, %v716
          %v721 = vadd.f32 %v697, %v719
          %v722 = vadd.f32 %v698, %v720
          %723 = vrot.lane.b32.xlu0 %v334, 17
          %v724 = vpop.permute.xlu0 %723
          %725 = vrot.lane.b32.xlu0 %v335, 17
          %v726 = vpop.permute.xlu0 %725
          %vm727 = vcmp.lt.s32.totalorder %v343, 17
          %v728 = vsel %vm727, %v724, %v726
          %v729 = vsel %vm727, %v726, %v724
          %s730 = scalar_lea.vmem [#allocation4], 64
          %v731 = vld [vmem:[%s730] sm:$0xf]
          %v734 = vunpack.c.l.s4 1983009808
          %v735 = vunpack.c.0.s8 %v734
          %v736 = vlaneseq
          %v737 = vshrl.u32 %v736, 7
          %v738 = vsub.s32 %v735, %v737
          %v739 = vrot.slane %v731, %v738
          %v740 = vcombine.high %v739, %v739
          %v743 = vmul.f32 %v729, %v739
          %v744 = vmul.f32 %v728, %v740
          %v745 = vadd.f32 %v721, %v743
          %v746 = vadd.f32 %v722, %v744
          %747 = vrot.lane.b32.xlu0 %v334, 16
          %v748 = vpop.permute.xlu0 %747
          %749 = vrot.lane.b32.xlu0 %v335, 16
          %v750 = vpop.permute.xlu0 %749
          %vm751 = vcmp.lt.s32.totalorder %v343, 16
          %v752 = vsel %vm751, %v748, %v750
          %v753 = vsel %vm751, %v750, %v748
          %s754 = scalar_lea.vmem [#allocation4], 68
          %v755 = vld [vmem:[%s754] sm:$0xf]
          %v758 = vunpack.c.l.s4 1983009808
          %v759 = vunpack.c.0.s8 %v758
          %v760 = vlaneseq
          %v761 = vshrl.u32 %v760, 7
          %v762 = vsub.s32 %v759, %v761
          %v763 = vrot.slane %v755, %v762
          %v764 = vcombine.high %v763, %v763
          %v767 = vmul.f32 %v753, %v763
          %v768 = vmul.f32 %v752, %v764
          %v769 = vadd.f32 %v745, %v767
          %v770 = vadd.f32 %v746, %v768
          %771 = vrot.lane.b32.xlu0 %v334, 15
          %v772 = vpop.permute.xlu0 %771
          %773 = vrot.lane.b32.xlu0 %v335, 15
          %v774 = vpop.permute.xlu0 %773
          %vm775 = vcmp.lt.s32.totalorder %v343, 15
          %v776 = vsel %vm775, %v772, %v774
          %v777 = vsel %vm775, %v774, %v772
          %s778 = scalar_lea.vmem [#allocation4], 72
          %v779 = vld [vmem:[%s778] sm:$0xf]
          %v782 = vunpack.c.l.s4 1983009808
          %v783 = vunpack.c.0.s8 %v782
          %v784 = vlaneseq
          %v785 = vshrl.u32 %v784, 7
          %v786 = vsub.s32 %v783, %v785
          %v787 = vrot.slane %v779, %v786
          %v788 = vcombine.high %v787, %v787
          %v791 = vmul.f32 %v777, %v787
          %v792 = vmul.f32 %v776, %v788
          %v793 = vadd.f32 %v769, %v791
          %v794 = vadd.f32 %v770, %v792
          %795 = vrot.lane.b32.xlu0 %v334, 14
          %v796 = vpop.permute.xlu0 %795
          %797 = vrot.lane.b32.xlu0 %v335, 14
          %v798 = vpop.permute.xlu0 %797
          %vm799 = vcmp.lt.s32.totalorder %v343, 14
          %v800 = vsel %vm799, %v796, %v798
          %v801 = vsel %vm799, %v798, %v796
          %s802 = scalar_lea.vmem [#allocation4], 76
          %v803 = vld [vmem:[%s802] sm:$0xf]
          %v806 = vunpack.c.l.s4 1983009808
          %v807 = vunpack.c.0.s8 %v806
          %v808 = vlaneseq
          %v809 = vshrl.u32 %v808, 7
          %v810 = vsub.s32 %v807, %v809
          %v811 = vrot.slane %v803, %v810
          %v812 = vcombine.high %v811, %v811
          %v815 = vmul.f32 %v801, %v811
          %v816 = vmul.f32 %v800, %v812
          %v817 = vadd.f32 %v793, %v815
          %v818 = vadd.f32 %v794, %v816
          %819 = vrot.lane.b32.xlu0 %v334, 13
          %v820 = vpop.permute.xlu0 %819
          %821 = vrot.lane.b32.xlu0 %v335, 13
          %v822 = vpop.permute.xlu0 %821
          %vm823 = vcmp.lt.s32.totalorder %v343, 13
          %v824 = vsel %vm823, %v820, %v822
          %v825 = vsel %vm823, %v822, %v820
          %s826 = scalar_lea.vmem [#allocation4], 80
          %v827 = vld [vmem:[%s826] sm:$0xf]
          %v830 = vunpack.c.l.s4 1983009808
          %v831 = vunpack.c.0.s8 %v830
          %v832 = vlaneseq
          %v833 = vshrl.u32 %v832, 7
          %v834 = vsub.s32 %v831, %v833
          %v835 = vrot.slane %v827, %v834
          %v836 = vcombine.high %v835, %v835
          %v839 = vmul.f32 %v825, %v835
          %v840 = vmul.f32 %v824, %v836
          %v841 = vadd.f32 %v817, %v839
          %v842 = vadd.f32 %v818, %v840
          %843 = vrot.lane.b32.xlu0 %v334, 3
          %v844 = vpop.permute.xlu0 %843
          %845 = vrot.lane.b32.xlu0 %v335, 3
          %v846 = vpop.permute.xlu0 %845
          %vm847 = vcmp.lt.s32.totalorder %v343, 3
          %v848 = vsel %vm847, %v844, %v846
          %v849 = vsel %vm847, %v846, %v844
          %s850 = scalar_lea.vmem [#allocation4], 84
          %v851 = vld [vmem:[%s850] sm:$0xf]
          %v854 = vunpack.c.l.s4 1983009808
          %v855 = vunpack.c.0.s8 %v854
          %v856 = vlaneseq
          %v857 = vshrl.u32 %v856, 7
          %v858 = vsub.s32 %v855, %v857
          %v859 = vrot.slane %v851, %v858
          %v860 = vcombine.high %v859, %v859
          %v863 = vmul.f32 %v849, %v859
          %v864 = vmul.f32 %v848, %v860
          %v865 = vadd.f32 %v841, %v863
          %v866 = vadd.f32 %v842, %v864
          %867 = vrot.lane.b32.xlu0 %v334, 2
          %v868 = vpop.permute.xlu0 %867
          %869 = vrot.lane.b32.xlu0 %v335, 2
          %v870 = vpop.permute.xlu0 %869
          %vm871 = vcmp.lt.s32.totalorder %v343, 2
          %v872 = vsel %vm871, %v868, %v870
          %v873 = vsel %vm871, %v870, %v868
          %s874 = scalar_lea.vmem [#allocation4], 88
          %v875 = vld [vmem:[%s874] sm:$0xf]
          %v878 = vunpack.c.l.s4 1983009808
          %v879 = vunpack.c.0.s8 %v878
          %v880 = vlaneseq
          %v881 = vshrl.u32 %v880, 7
          %v882 = vsub.s32 %v879, %v881
          %v883 = vrot.slane %v875, %v882
          %v884 = vcombine.high %v883, %v883
          %v887 = vmul.f32 %v873, %v883
          %v888 = vmul.f32 %v872, %v884
          %v889 = vadd.f32 %v865, %v887
          %v890 = vadd.f32 %v866, %v888
          %891 = vrot.lane.b32.xlu0 %v334, 1
          %v892 = vpop.permute.xlu0 %891
          %893 = vrot.lane.b32.xlu0 %v335, 1
          %v894 = vpop.permute.xlu0 %893
          %vm895 = vcmp.lt.s32.totalorder %v343, 1
          %v896 = vsel %vm895, %v892, %v894
          %v897 = vsel %vm895, %v894, %v892
          %s898 = scalar_lea.vmem [#allocation4], 92
          %v899 = vld [vmem:[%s898] sm:$0xf]
          %v902 = vunpack.c.l.s4 1983009808
          %v903 = vunpack.c.0.s8 %v902
          %v904 = vlaneseq
          %v905 = vshrl.u32 %v904, 7
          %v906 = vsub.s32 %v903, %v905
          %v907 = vrot.slane %v899, %v906
          %v908 = vcombine.high %v907, %v907
          %v911 = vmul.f32 %v897, %v907
          %v912 = vmul.f32 %v896, %v908
          %v913 = vadd.f32 %v889, %v911
          %v914 = vadd.f32 %v890, %v912
          %s915 = scalar_lea.vmem [#allocation4], 96
          %v916 = vld [vmem:[%s915] sm:$0xf]
          %v917 = vmul.f32 %v326, %v916
          %v920 = vunpack.c.l.s4 1983009808
          %v921 = vunpack.c.0.s8 %v920
          %v922 = vlaneseq
          %v923 = vshrl.u32 %v922, 7
          %v924 = vsub.s32 %v921, %v923
          %v925 = vrot.slane %v917, %v924
          %v926 = vcombine.high %v925, %v925
          %v929 = vadd.f32 %v913, %v925
          %v930 = vadd.f32 %v914, %v926
          %931 = vrot.lane.b32.xlu0 %v334, 127
          %v932 = vpop.permute.xlu0 %931
          %933 = vrot.lane.b32.xlu0 %v335, 127
          %v934 = vpop.permute.xlu0 %933
          %vm935 = vcmp.lt.s32.totalorder %v343, 127
          %v936 = vsel %vm935, %v932, %v934
          %v937 = vsel %vm935, %v934, %v932
          %s938 = scalar_lea.vmem [#allocation4], 100
          %v939 = vld [vmem:[%s938] sm:$0xf]
          %v942 = vunpack.c.l.s4 1983009808
          %v943 = vunpack.c.0.s8 %v942
          %v944 = vlaneseq
          %v945 = vshrl.u32 %v944, 7
          %v946 = vsub.s32 %v943, %v945
          %v947 = vrot.slane %v939, %v946
          %v948 = vcombine.high %v947, %v947
          %v951 = vmul.f32 %v936, %v947
          %v952 = vmul.f32 %v937, %v948
          %v953 = vadd.f32 %v929, %v951
          %v954 = vadd.f32 %v930, %v952
          %955 = vrot.lane.b32.xlu0 %v334, 126
          %v956 = vpop.permute.xlu0 %955
          %957 = vrot.lane.b32.xlu0 %v335, 126
          %v958 = vpop.permute.xlu0 %957
          %vm959 = vcmp.lt.s32.totalorder %v343, 126
          %v960 = vsel %vm959, %v956, %v958
          %v961 = vsel %vm959, %v958, %v956
          %s962 = scalar_lea.vmem [#allocation4], 104
          %v963 = vld [vmem:[%s962] sm:$0xf]
          %v966 = vunpack.c.l.s4 1983009808
          %v967 = vunpack.c.0.s8 %v966
          %v968 = vlaneseq
          %v969 = vshrl.u32 %v968, 7
          %v970 = vsub.s32 %v967, %v969
          %v971 = vrot.slane %v963, %v970
          %v972 = vcombine.high %v971, %v971
          %v975 = vmul.f32 %v960, %v971
          %v976 = vmul.f32 %v961, %v972
          %v977 = vadd.f32 %v953, %v975
          %v978 = vadd.f32 %v954, %v976
          %979 = vrot.lane.b32.xlu0 %v334, 125
          %v980 = vpop.permute.xlu0 %979
          %981 = vrot.lane.b32.xlu0 %v335, 125
          %v982 = vpop.permute.xlu0 %981
          %vm983 = vcmp.lt.s32.totalorder %v343, 125
          %v984 = vsel %vm983, %v980, %v982
          %v985 = vsel %vm983, %v982, %v980
          %s986 = scalar_lea.vmem [#allocation4], 108
          %v987 = vld [vmem:[%s986] sm:$0xf]
          %v990 = vunpack.c.l.s4 1983009808
          %v991 = vunpack.c.0.s8 %v990
          %v992 = vlaneseq
          %v993 = vshrl.u32 %v992, 7
          %v994 = vsub.s32 %v991, %v993
          %v995 = vrot.slane %v987, %v994
          %v996 = vcombine.high %v995, %v995
          %v999 = vmul.f32 %v984, %v995
          %v1000 = vmul.f32 %v985, %v996
          %v1001 = vadd.f32 %v977, %v999
          %v1002 = vadd.f32 %v978, %v1000
          %1003 = vrot.lane.b32.xlu0 %v334, 115
          %v1004 = vpop.permute.xlu0 %1003
          %1005 = vrot.lane.b32.xlu0 %v335, 115
          %v1006 = vpop.permute.xlu0 %1005
          %vm1007 = vcmp.lt.s32.totalorder %v343, 115
          %v1008 = vsel %vm1007, %v1004, %v1006
          %v1009 = vsel %vm1007, %v1006, %v1004
          %s1010 = scalar_lea.vmem [#allocation4], 112
          %v1011 = vld [vmem:[%s1010] sm:$0xf]
          %v1014 = vunpack.c.l.s4 1983009808
          %v1015 = vunpack.c.0.s8 %v1014
          %v1016 = vlaneseq
          %v1017 = vshrl.u32 %v1016, 7
          %v1018 = vsub.s32 %v1015, %v1017
          %v1019 = vrot.slane %v1011, %v1018
          %v1020 = vcombine.high %v1019, %v1019
          %v1023 = vmul.f32 %v1008, %v1019
          %v1024 = vmul.f32 %v1009, %v1020
          %v1025 = vadd.f32 %v1001, %v1023
          %v1026 = vadd.f32 %v1002, %v1024
          %1027 = vrot.lane.b32.xlu0 %v334, 114
          %v1028 = vpop.permute.xlu0 %1027
          %1029 = vrot.lane.b32.xlu0 %v335, 114
          %v1030 = vpop.permute.xlu0 %1029
          %vm1031 = vcmp.lt.s32.totalorder %v343, 114
          %v1032 = vsel %vm1031, %v1028, %v1030
          %v1033 = vsel %vm1031, %v1030, %v1028
          %s1034 = scalar_lea.vmem [#allocation4], 116
          %v1035 = vld [vmem:[%s1034] sm:$0xf]
          %v1038 = vunpack.c.l.s4 1983009808
          %v1039 = vunpack.c.0.s8 %v1038
          %v1040 = vlaneseq
          %v1041 = vshrl.u32 %v1040, 7
          %v1042 = vsub.s32 %v1039, %v1041
          %v1043 = vrot.slane %v1035, %v1042
          %v1044 = vcombine.high %v1043, %v1043
          %v1047 = vmul.f32 %v1032, %v1043
          %v1048 = vmul.f32 %v1033, %v1044
          %v1049 = vadd.f32 %v1025, %v1047
          %v1050 = vadd.f32 %v1026, %v1048
          %1051 = vrot.lane.b32.xlu0 %v334, 113
          %v1052 = vpop.permute.xlu0 %1051
          %1053 = vrot.lane.b32.xlu0 %v335, 113
          %v1054 = vpop.permute.xlu0 %1053
          %vm1055 = vcmp.lt.s32.totalorder %v343, 113
          %v1056 = vsel %vm1055, %v1052, %v1054
          %v1057 = vsel %vm1055, %v1054, %v1052
          %s1058 = scalar_lea.vmem [#allocation4], 120
          %v1059 = vld [vmem:[%s1058] sm:$0xf]
          %v1062 = vunpack.c.l.s4 1983009808
          %v1063 = vunpack.c.0.s8 %v1062
          %v1064 = vlaneseq
          %v1065 = vshrl.u32 %v1064, 7
          %v1066 = vsub.s32 %v1063, %v1065
          %v1067 = vrot.slane %v1059, %v1066
          %v1068 = vcombine.high %v1067, %v1067
          %v1071 = vmul.f32 %v1056, %v1067
          %v1072 = vmul.f32 %v1057, %v1068
          %v1073 = vadd.f32 %v1049, %v1071
          %v1074 = vadd.f32 %v1050, %v1072
          %1075 = vrot.lane.b32.xlu0 %v334, 112
          %v1076 = vpop.permute.xlu0 %1075
          %1077 = vrot.lane.b32.xlu0 %v335, 112
          %v1078 = vpop.permute.xlu0 %1077
          %vm1079 = vcmp.lt.s32.totalorder %v343, 112
          %v1080 = vsel %vm1079, %v1076, %v1078
          %v1081 = vsel %vm1079, %v1078, %v1076
          %s1082 = scalar_lea.vmem [#allocation4], 124
          %v1083 = vld [vmem:[%s1082] sm:$0xf]
          %v1086 = vunpack.c.l.s4 1983009808
          %v1087 = vunpack.c.0.s8 %v1086
          %v1088 = vlaneseq
          %v1089 = vshrl.u32 %v1088, 7
          %v1090 = vsub.s32 %v1087, %v1089
          %v1091 = vrot.slane %v1083, %v1090
          %v1092 = vcombine.high %v1091, %v1091
          %v1095 = vmul.f32 %v1080, %v1091
          %v1096 = vmul.f32 %v1081, %v1092
          %v1097 = vadd.f32 %v1073, %v1095
          %v1098 = vadd.f32 %v1074, %v1096
          %1099 = vrot.lane.b32.xlu0 %v334, 111
          %v1100 = vpop.permute.xlu0 %1099
          %1101 = vrot.lane.b32.xlu0 %v335, 111
          %v1102 = vpop.permute.xlu0 %1101
          %vm1103 = vcmp.lt.s32.totalorder %v343, 111
          %v1104 = vsel %vm1103, %v1100, %v1102
          %v1105 = vsel %vm1103, %v1102, %v1100
          %s1106 = scalar_lea.vmem [#allocation4], 128
          %v1107 = vld [vmem:[%s1106] sm:$0xf]
          %v1110 = vunpack.c.l.s4 1983009808
          %v1111 = vunpack.c.0.s8 %v1110
          %v1112 = vlaneseq
          %v1113 = vshrl.u32 %v1112, 7
          %v1114 = vsub.s32 %v1111, %v1113
          %v1115 = vrot.slane %v1107, %v1114
          %v1116 = vcombine.high %v1115, %v1115
          %v1119 = vmul.f32 %v1104, %v1115
          %v1120 = vmul.f32 %v1105, %v1116
          %v1121 = vadd.f32 %v1097, %v1119
          %v1122 = vadd.f32 %v1098, %v1120
          %1123 = vrot.lane.b32.xlu0 %v334, 110
          %v1124 = vpop.permute.xlu0 %1123
          %1125 = vrot.lane.b32.xlu0 %v335, 110
          %v1126 = vpop.permute.xlu0 %1125
          %vm1127 = vcmp.lt.s32.totalorder %v343, 110
          %v1128 = vsel %vm1127, %v1124, %v1126
          %v1129 = vsel %vm1127, %v1126, %v1124
          %s1130 = scalar_lea.vmem [#allocation4], 132
          %v1131 = vld [vmem:[%s1130] sm:$0xf]
          %v1134 = vunpack.c.l.s4 1983009808
          %v1135 = vunpack.c.0.s8 %v1134
          %v1136 = vlaneseq
          %v1137 = vshrl.u32 %v1136, 7
          %v1138 = vsub.s32 %v1135, %v1137
          %v1139 = vrot.slane %v1131, %v1138
          %v1140 = vcombine.high %v1139, %v1139
          %v1143 = vmul.f32 %v1128, %v1139
          %v1144 = vmul.f32 %v1129, %v1140
          %v1145 = vadd.f32 %v1121, %v1143
          %v1146 = vadd.f32 %v1122, %v1144
          %1147 = vrot.lane.b32.xlu0 %v334, 109
          %v1148 = vpop.permute.xlu0 %1147
          %1149 = vrot.lane.b32.xlu0 %v335, 109
          %v1150 = vpop.permute.xlu0 %1149
          %vm1151 = vcmp.lt.s32.totalorder %v343, 109
          %v1152 = vsel %vm1151, %v1148, %v1150
          %v1153 = vsel %vm1151, %v1150, %v1148
          %s1154 = scalar_lea.vmem [#allocation4], 136
          %v1155 = vld [vmem:[%s1154] sm:$0xf]
          %v1158 = vunpack.c.l.s4 1983009808
          %v1159 = vunpack.c.0.s8 %v1158
          %v1160 = vlaneseq
          %v1161 = vshrl.u32 %v1160, 7
          %v1162 = vsub.s32 %v1159, %v1161
          %v1163 = vrot.slane %v1155, %v1162
          %v1164 = vcombine.high %v1163, %v1163
          %v1167 = vmul.f32 %v1152, %v1163
          %v1168 = vmul.f32 %v1153, %v1164
          %v1169 = vadd.f32 %v1145, %v1167
          %v1170 = vadd.f32 %v1146, %v1168
          %1171 = vrot.lane.b32.xlu0 %v334, 99
          %v1172 = vpop.permute.xlu0 %1171
          %1173 = vrot.lane.b32.xlu0 %v335, 99
          %v1174 = vpop.permute.xlu0 %1173
          %vm1175 = vcmp.lt.s32.totalorder %v343, 99
          %v1176 = vsel %vm1175, %v1172, %v1174
          %v1177 = vsel %vm1175, %v1174, %v1172
          %s1178 = scalar_lea.vmem [#allocation4], 140
          %v1179 = vld [vmem:[%s1178] sm:$0xf]
          %v1182 = vunpack.c.l.s4 1983009808
          %v1183 = vunpack.c.0.s8 %v1182
          %v1184 = vlaneseq
          %v1185 = vshrl.u32 %v1184, 7
          %v1186 = vsub.s32 %v1183, %v1185
          %v1187 = vrot.slane %v1179, %v1186
          %v1188 = vcombine.high %v1187, %v1187
          %v1191 = vmul.f32 %v1176, %v1187
          %v1192 = vmul.f32 %v1177, %v1188
          %v1193 = vadd.f32 %v1169, %v1191
          %v1194 = vadd.f32 %v1170, %v1192
          %1195 = vrot.lane.b32.xlu0 %v334, 98
          %v1196 = vpop.permute.xlu0 %1195
          %1197 = vrot.lane.b32.xlu0 %v335, 98
          %v1198 = vpop.permute.xlu0 %1197
          %vm1199 = vcmp.lt.s32.totalorder %v343, 98
          %v1200 = vsel %vm1199, %v1196, %v1198
          %v1201 = vsel %vm1199, %v1198, %v1196
          %s1202 = scalar_lea.vmem [#allocation4], 144
          %v1203 = vld [vmem:[%s1202] sm:$0xf]
          %v1206 = vunpack.c.l.s4 1983009808
          %v1207 = vunpack.c.0.s8 %v1206
          %v1208 = vlaneseq
          %v1209 = vshrl.u32 %v1208, 7
          %v1210 = vsub.s32 %v1207, %v1209
          %v1211 = vrot.slane %v1203, %v1210
          %v1212 = vcombine.high %v1211, %v1211
          %v1215 = vmul.f32 %v1200, %v1211
          %v1216 = vmul.f32 %v1201, %v1212
          %v1217 = vadd.f32 %v1193, %v1215
          %v1218 = vadd.f32 %v1194, %v1216
          %1219 = vrot.lane.b32.xlu0 %v334, 97
          %v1220 = vpop.permute.xlu0 %1219
          %1221 = vrot.lane.b32.xlu0 %v335, 97
          %v1222 = vpop.permute.xlu0 %1221
          %vm1223 = vcmp.lt.s32.totalorder %v343, 97
          %v1224 = vsel %vm1223, %v1220, %v1222
          %v1225 = vsel %vm1223, %v1222, %v1220
          %s1226 = scalar_lea.vmem [#allocation4], 148
          %v1227 = vld [vmem:[%s1226] sm:$0xf]
          %v1230 = vunpack.c.l.s4 1983009808
          %v1231 = vunpack.c.0.s8 %v1230
          %v1232 = vlaneseq
          %v1233 = vshrl.u32 %v1232, 7
          %v1234 = vsub.s32 %v1231, %v1233
          %v1235 = vrot.slane %v1227, %v1234
          %v1236 = vcombine.high %v1235, %v1235
          %v1239 = vmul.f32 %v1224, %v1235
          %v1240 = vmul.f32 %v1225, %v1236
          %v1241 = vadd.f32 %v1217, %v1239
          %v1242 = vadd.f32 %v1218, %v1240
          %1243 = vrot.lane.b32.xlu0 %v334, 96
          %v1244 = vpop.permute.xlu0 %1243
          %1245 = vrot.lane.b32.xlu0 %v335, 96
          %v1246 = vpop.permute.xlu0 %1245
          %vm1247 = vcmp.lt.s32.totalorder %v343, 96
          %v1248 = vsel %vm1247, %v1244, %v1246
          %v1249 = vsel %vm1247, %v1246, %v1244
          %s1250 = scalar_lea.vmem [#allocation4], 152
          %v1251 = vld [vmem:[%s1250] sm:$0xf]
          %v1254 = vunpack.c.l.s4 1983009808
          %v1255 = vunpack.c.0.s8 %v1254
          %v1256 = vlaneseq
          %v1257 = vshrl.u32 %v1256, 7
          %v1258 = vsub.s32 %v1255, %v1257
          %v1259 = vrot.slane %v1251, %v1258
          %v1260 = vcombine.high %v1259, %v1259
          %v1263 = vmul.f32 %v1248, %v1259
          %v1264 = vmul.f32 %v1249, %v1260
          %v1265 = vadd.f32 %v1241, %v1263
          %v1266 = vadd.f32 %v1242, %v1264
          %1267 = vrot.lane.b32.xlu0 %v334, 95
          %v1268 = vpop.permute.xlu0 %1267
          %1269 = vrot.lane.b32.xlu0 %v335, 95
          %v1270 = vpop.permute.xlu0 %1269
          %vm1271 = vcmp.lt.s32.totalorder %v343, 95
          %v1272 = vsel %vm1271, %v1268, %v1270
          %v1273 = vsel %vm1271, %v1270, %v1268
          %s1274 = scalar_lea.vmem [#allocation4], 156
          %v1275 = vld [vmem:[%s1274] sm:$0xf]
          %v1278 = vunpack.c.l.s4 1983009808
          %v1279 = vunpack.c.0.s8 %v1278
          %v1280 = vlaneseq
          %v1281 = vshrl.u32 %v1280, 7
          %v1282 = vsub.s32 %v1279, %v1281
          %v1283 = vrot.slane %v1275, %v1282
          %v1284 = vcombine.high %v1283, %v1283
          %v1287 = vmul.f32 %v1272, %v1283
          %v1288 = vmul.f32 %v1273, %v1284
          %v1289 = vadd.f32 %v1265, %v1287
          %v1290 = vadd.f32 %v1266, %v1288
          %1291 = vrot.lane.b32.xlu0 %v334, 94
          %v1292 = vpop.permute.xlu0 %1291
          %1293 = vrot.lane.b32.xlu0 %v335, 94
          %v1294 = vpop.permute.xlu0 %1293
          %vm1295 = vcmp.lt.s32.totalorder %v343, 94
          %v1296 = vsel %vm1295, %v1292, %v1294
          %v1297 = vsel %vm1295, %v1294, %v1292
          %s1298 = scalar_lea.vmem [#allocation4], 160
          %v1299 = vld [vmem:[%s1298] sm:$0xf]
          %v1302 = vunpack.c.l.s4 1983009808
          %v1303 = vunpack.c.0.s8 %v1302
          %v1304 = vlaneseq
          %v1305 = vshrl.u32 %v1304, 7
          %v1306 = vsub.s32 %v1303, %v1305
          %v1307 = vrot.slane %v1299, %v1306
          %v1308 = vcombine.high %v1307, %v1307
          %v1311 = vmul.f32 %v1296, %v1307
          %v1312 = vmul.f32 %v1297, %v1308
          %v1313 = vadd.f32 %v1289, %v1311
          %v1314 = vadd.f32 %v1290, %v1312
          %1315 = vrot.lane.b32.xlu0 %v334, 93
          %v1316 = vpop.permute.xlu0 %1315
          %1317 = vrot.lane.b32.xlu0 %v335, 93
          %v1318 = vpop.permute.xlu0 %1317
          %vm1319 = vcmp.lt.s32.totalorder %v343, 93
          %v1320 = vsel %vm1319, %v1316, %v1318
          %v1321 = vsel %vm1319, %v1318, %v1316
          %s1322 = scalar_lea.vmem [#allocation4], 164
          %v1323 = vld [vmem:[%s1322] sm:$0xf]
          %v1326 = vunpack.c.l.s4 1983009808
          %v1327 = vunpack.c.0.s8 %v1326
          %v1328 = vlaneseq
          %v1329 = vshrl.u32 %v1328, 7
          %v1330 = vsub.s32 %v1327, %v1329
          %v1331 = vrot.slane %v1323, %v1330
          %v1332 = vcombine.high %v1331, %v1331
          %v1335 = vmul.f32 %v1320, %v1331
          %v1336 = vmul.f32 %v1321, %v1332
          %v1337 = vadd.f32 %v1313, %v1335
          %v1338 = vadd.f32 %v1314, %v1336
          %1339 = vrot.lane.b32.xlu0 %v334, 83
          %v1340 = vpop.permute.xlu0 %1339
          %1341 = vrot.lane.b32.xlu0 %v335, 83
          %v1342 = vpop.permute.xlu0 %1341
          %vm1343 = vcmp.lt.s32.totalorder %v343, 83
          %v1344 = vsel %vm1343, %v1340, %v1342
          %v1345 = vsel %vm1343, %v1342, %v1340
          %s1346 = scalar_lea.vmem [#allocation4], 168
          %v1347 = vld [vmem:[%s1346] sm:$0xf]
          %v1350 = vunpack.c.l.s4 1983009808
          %v1351 = vunpack.c.0.s8 %v1350
          %v1352 = vlaneseq
          %v1353 = vshrl.u32 %v1352, 7
          %v1354 = vsub.s32 %v1351, %v1353
          %v1355 = vrot.slane %v1347, %v1354
          %v1356 = vcombine.high %v1355, %v1355
          %v1359 = vmul.f32 %v1344, %v1355
          %v1360 = vmul.f32 %v1345, %v1356
          %v1361 = vadd.f32 %v1337, %v1359
          %v1362 = vadd.f32 %v1338, %v1360
          %1363 = vrot.lane.b32.xlu0 %v334, 82
          %v1364 = vpop.permute.xlu0 %1363
          %1365 = vrot.lane.b32.xlu0 %v335, 82
          %v1366 = vpop.permute.xlu0 %1365
          %vm1367 = vcmp.lt.s32.totalorder %v343, 82
          %v1368 = vsel %vm1367, %v1364, %v1366
          %v1369 = vsel %vm1367, %v1366, %v1364
          %s1370 = scalar_lea.vmem [#allocation4], 172
          %v1371 = vld [vmem:[%s1370] sm:$0xf]
          %v1374 = vunpack.c.l.s4 1983009808
          %v1375 = vunpack.c.0.s8 %v1374
          %v1376 = vlaneseq
          %v1377 = vshrl.u32 %v1376, 7
          %v1378 = vsub.s32 %v1375, %v1377
          %v1379 = vrot.slane %v1371, %v1378
          %v1380 = vcombine.high %v1379, %v1379
          %v1383 = vmul.f32 %v1368, %v1379
          %v1384 = vmul.f32 %v1369, %v1380
          %v1385 = vadd.f32 %v1361, %v1383
          %v1386 = vadd.f32 %v1362, %v1384
          %1387 = vrot.lane.b32.xlu0 %v334, 81
          %v1388 = vpop.permute.xlu0 %1387
          %1389 = vrot.lane.b32.xlu0 %v335, 81
          %v1390 = vpop.permute.xlu0 %1389
          %vm1391 = vcmp.lt.s32.totalorder %v343, 81
          %v1392 = vsel %vm1391, %v1388, %v1390
          %v1393 = vsel %vm1391, %v1390, %v1388
          %s1394 = scalar_lea.vmem [#allocation4], 176
          %v1395 = vld [vmem:[%s1394] sm:$0xf]
          %v1398 = vunpack.c.l.s4 1983009808
          %v1399 = vunpack.c.0.s8 %v1398
          %v1400 = vlaneseq
          %v1401 = vshrl.u32 %v1400, 7
          %v1402 = vsub.s32 %v1399, %v1401
          %v1403 = vrot.slane %v1395, %v1402
          %v1404 = vcombine.high %v1403, %v1403
          %v1407 = vmul.f32 %v1392, %v1403
          %v1408 = vmul.f32 %v1393, %v1404
          %v1409 = vadd.f32 %v1385, %v1407
          %v1410 = vadd.f32 %v1386, %v1408
          %1411 = vrot.lane.b32.xlu0 %v334, 80
          %v1412 = vpop.permute.xlu0 %1411
          %1413 = vrot.lane.b32.xlu0 %v335, 80
          %v1414 = vpop.permute.xlu0 %1413
          %vm1415 = vcmp.lt.s32.totalorder %v343, 80
          %v1416 = vsel %vm1415, %v1412, %v1414
          %v1417 = vsel %vm1415, %v1414, %v1412
          %s1418 = scalar_lea.vmem [#allocation4], 180
          %v1419 = vld [vmem:[%s1418] sm:$0xf]
          %v1422 = vunpack.c.l.s4 1983009808
          %v1423 = vunpack.c.0.s8 %v1422
          %v1424 = vlaneseq
          %v1425 = vshrl.u32 %v1424, 7
          %v1426 = vsub.s32 %v1423, %v1425
          %v1427 = vrot.slane %v1419, %v1426
          %v1428 = vcombine.high %v1427, %v1427
          %v1431 = vmul.f32 %v1416, %v1427
          %v1432 = vmul.f32 %v1417, %v1428
          %v1433 = vadd.f32 %v1409, %v1431
          %v1434 = vadd.f32 %v1410, %v1432
          %1435 = vrot.lane.b32.xlu0 %v334, 79
          %v1436 = vpop.permute.xlu0 %1435
          %1437 = vrot.lane.b32.xlu0 %v335, 79
          %v1438 = vpop.permute.xlu0 %1437
          %vm1439 = vcmp.lt.s32.totalorder %v343, 79
          %v1440 = vsel %vm1439, %v1436, %v1438
          %v1441 = vsel %vm1439, %v1438, %v1436
          %s1442 = scalar_lea.vmem [#allocation4], 184
          %v1443 = vld [vmem:[%s1442] sm:$0xf]
          %v1446 = vunpack.c.l.s4 1983009808
          %v1447 = vunpack.c.0.s8 %v1446
          %v1448 = vlaneseq
          %v1449 = vshrl.u32 %v1448, 7
          %v1450 = vsub.s32 %v1447, %v1449
          %v1451 = vrot.slane %v1443, %v1450
          %v1452 = vcombine.high %v1451, %v1451
          %v1455 = vmul.f32 %v1440, %v1451
          %v1456 = vmul.f32 %v1441, %v1452
          %v1457 = vadd.f32 %v1433, %v1455
          %v1458 = vadd.f32 %v1434, %v1456
          %1459 = vrot.lane.b32.xlu0 %v334, 78
          %v1460 = vpop.permute.xlu0 %1459
          %1461 = vrot.lane.b32.xlu0 %v335, 78
          %v1462 = vpop.permute.xlu0 %1461
          %vm1463 = vcmp.lt.s32.totalorder %v343, 78
          %v1464 = vsel %vm1463, %v1460, %v1462
          %v1465 = vsel %vm1463, %v1462, %v1460
          %s1466 = scalar_lea.vmem [#allocation4], 188
          %v1467 = vld [vmem:[%s1466] sm:$0xf]
          %v1470 = vunpack.c.l.s4 1983009808
          %v1471 = vunpack.c.0.s8 %v1470
          %v1472 = vlaneseq
          %v1473 = vshrl.u32 %v1472, 7
          %v1474 = vsub.s32 %v1471, %v1473
          %v1475 = vrot.slane %v1467, %v1474
          %v1476 = vcombine.high %v1475, %v1475
          %v1479 = vmul.f32 %v1464, %v1475
          %v1480 = vmul.f32 %v1465, %v1476
          %v1481 = vadd.f32 %v1457, %v1479
          %v1482 = vadd.f32 %v1458, %v1480
          %1483 = vrot.lane.b32.xlu0 %v334, 77
          %v1484 = vpop.permute.xlu0 %1483
          %1485 = vrot.lane.b32.xlu0 %v335, 77
          %v1486 = vpop.permute.xlu0 %1485
          %vm1487 = vcmp.lt.s32.totalorder %v343, 77
          %v1488 = vsel %vm1487, %v1484, %v1486
          %v1489 = vsel %vm1487, %v1486, %v1484
          %s1490 = scalar_lea.vmem [#allocation4], 192
          %v1491 = vld [vmem:[%s1490] sm:$0xf]
          %v1494 = vunpack.c.l.s4 1983009808
          %v1495 = vunpack.c.0.s8 %v1494
          %v1496 = vlaneseq
          %v1497 = vshrl.u32 %v1496, 7
          %v1498 = vsub.s32 %v1495, %v1497
          %v1499 = vrot.slane %v1491, %v1498
          %v1500 = vcombine.high %v1499, %v1499
          %v1503 = vmul.f32 %v1488, %v1499
          %v1504 = vmul.f32 %v1489, %v1500
          %v1505 = vadd.f32 %v1481, %v1503
          %v1506 = vadd.f32 %v1482, %v1504
          %v1509 = vrot.slane %v1505, 1
          %v1510 = vrot.slane %v1506, 1
          %v1513 = vadd.f32 %v1505, %v1509
          %v1514 = vadd.f32 %v1506, %v1510
          %v1515 = vxor.u32 %v1513, 2147483648
          %v1516 = vxor.u32 %v1514, 2147483648
          %v1517 = vmul.f32 %v1515, 1.442695
          %v1518 = vpow.pop %v1517
          %v1519 = vmul.f32 %v1516, 1.442695
          %v1520 = vpow.pop %v1519
          %v1521 = vadd.f32 %v1518, 1.0
          %v1522 = vadd.f32 %v1520, 1.0
          %v1523 = vrcp.pop %v1521
          %v1524 = vmul.f32 1.0, %v1523
          %v1525 = vrcp.pop %v1522
          %v1526 = vmul.f32 1.0, %v1525
          %v1529 = vcombine.low %v1524, %v1526
          %v1531 = vunpack.c.l.s4 1966171168
          %v1532 = vunpack.c.0.s8 %v1531
          %v1533 = vlaneseq
          %v1534 = vshrl.u32 %v1533, 7
          %v1535 = vsub.s32 %v1532, %v1534
          %v1536 = vrot.slane %v1529, %v1535
          %v1538 = vunpack.c.l.s4 1966171168
          %v1539 = vunpack.c.0.s8 %v1538
          %v1540 = vlaneseq
          %v1541 = vshrl.u32 %v1540, 7
          %v1542 = vsub.s32 %v1539, %v1541
          %v1543 = vrot.slane %v1536, %v1542
          %v1545 = vlaneseq
          %vm1546 = vcmp.ge.s32.totalorder %v1545, 0
          %vm1547 = vcmp.lt.s32.totalorder %v1545, 256
          %vm1548 = vmand %vm1546, %vm1547
          %1549 = vst.msk [vmem:[%s190] sm:$0x3] %vm1548, %v1543
        $region48: #{tpu_custom_call.1} parent=27 // pred_fallthru
          _
        %s1550 = sand.u32 %s89, 1
        %s1551 = scalar_lea.sflag [#allocation6], %s1550
        %s1552 = sand.u32 %s89, 1
        %s1553 = smul.addr %s1552, 2
        %s1554 = scalar_lea.vmem [#allocation9], %s1553
        // Predicated region
        $region49: #{tpu_custom_call.1} parent=27 // pred_check
          %p1555 = pneg %p99
        $region50: #{tpu_custom_call.1} parent=27 // pred_check_branch
          %1557 = sbr.rel (%p1555) target = $region52
        $region51: #{tpu_custom_call.1} parent=27 // pred_region
          %s1559 = ssub.s32 32, 32
          %1560 = vsyncadd %s1551, %s1559
          %s1561 = smul.addr %s24, 2
          %s1562 = smul.addr %s1561, 16
          %s1563 = scalar_lea.hbm %s2, %s1562
          %s1565 = sshll.u32 %s1554, 4
          %s1566 = int_to_ptr.vmem [resolvable:$true] %s1565
          %1568 = dma.vmem_to_hbm [thread:$0]  %s1566, 32, %s1563, %s1551
        $region52: #{tpu_custom_call.1} parent=27 // pred_fallthru
          _
      $region28: #{tpu_custom_call.1} parent=5 // pred_fallthru
        _
      %p1569 = scmp.le.s32.totalorder 2, %s15
      // Predicated region
      $region53: #{tpu_custom_call.1} parent=5 // pred_check
        %p1570 = pneg %p1569
      $region54: #{tpu_custom_call.1} parent=5 // pred_check_branch
        %1572 = sbr.rel (%p1570) target = $region56
      $region55: #{tpu_custom_call.1} parent=5 // pred_region
        %s1573 = ssub.s32 %s15, 2
        // Predicated region
        $region57: #{tpu_custom_call.1} parent=55 // pred_check
          %p1574 = pneg %p105
        $region58: #{tpu_custom_call.1} parent=55 // pred_check_branch
          %1576 = sbr.rel (%p1574) target = $region60
        $region59: #{tpu_custom_call.1} parent=55 // pred_region
          %s1577 = sand.u32 %s90, 1
          %s1578 = scalar_lea.sflag [#allocation6], %s1577
          %s1579 = sand.u32 %s90, 1
          %s1580 = smul.addr %s1579, 2
          %s1581 = scalar_lea.vmem [#allocation9], %s1580
          %1582 = dma.done %s1578, 32
        $region60: #{tpu_custom_call.1} parent=55 // pred_fallthru
          _
      $region56: #{tpu_custom_call.1} parent=5 // pred_fallthru
        _
    $region6: #{tpu_custom_call.1} parent=1 // loop_footer
      %s19 = sadd.s32 1, %s15
    $region7: #{tpu_custom_call.1} parent=1 // loop_footer_branch
      %14 = sbr.rel target = $region3
    $region8: #{tpu_custom_call.1} parent=1 // loop_exit
      _
    %1583 = vsyncpa [#allocation5], 1
    %s1584 = scalar_lea.sflag [#allocation5], 1
    %1585 = vsyncpa %s1584, 1
    %1586 = vsyncpa [#allocation8], 1
    %s1587 = scalar_lea.sflag [#allocation8], 1
    %1588 = vsyncpa %s1587, 1
    %1589 = vsyncpa [#allocation6], 1
    %s1590 = scalar_lea.sflag [#allocation6], 1
    %1591 = vsyncpa %s1590, 1

</llo_original>
